<compile_context>
chip_gen: v7x
topology: tpu7x:2x2x1
jax: 0.10.0
libtpu: 0.0.40
codegen_flags: <defaults>
</compile_context>

<pallas_src>
import jax
import jax.numpy as jnp
from jax.experimental import pallas as pl
from jax.experimental.pallas import tpu as pltpu

LANE = 128                 # batch is folded as (rows, 128 lanes)
SUB = 8                    # sublane granularity
TILE_ROWS_MAX = 128        # 128 rows x 128 lanes = 16384 samples per grid step
OUT_FEATURES = 10

# (in_features, out_features) per layer, as declared in the PyTorch __init__.
LAYER_DIMS = ((1, 2), (2, 4), (4, 6), (6, 8), (9, 10))

# Flat parameter layout: per layer, weights row-major [in, out], then bias.
_W_OFF, _B_OFF = [], []
_off = 0
for _fin, _fout in LAYER_DIMS:
    _W_OFF.append(_off)
    _off += _fin * _fout
    _B_OFF.append(_off)
    _off += _fout
PARAM_LEN = _off            # 202 f32 scalars -> ~1 KiB of SMEM


def _cdiv(a, b):
    return (a + b - 1) // b


def _round_up(a, b):
    return _cdiv(a, b) * b


def _make_kernel(tile_rows, chunk_rows):
    """Fused 5-layer MLP on the VPU.

    x_ref: [tile_rows, 128] f32 (one input feature per sample, batch on lanes)
    p_ref: [PARAM_LEN] f32 in SMEM (packed weights + biases)
    o_ref: [10, tile_rows, 128] f32 (feature-major output, lane-dense)
    """
    n_chunks = tile_rows // chunk_rows

    def kernel(x_ref, p_ref, o_ref):
        # Hoist all scalar parameter reads out of the chunk loop (one SMEM read
        # each per tile, reused by every chunk).
        p = [p_ref[i] for i in range(PARAM_LEN)]

        for c in range(n_chunks):                      # static unroll
            r0 = c * chunk_rows
            # Feature "planes": list of [chunk_rows, 128] arrays (one per feature).
            h = [x_ref[pl.ds(r0, chunk_rows), :]]
            for li, (fin, fout) in enumerate(LAYER_DIMS):
                w0, b0 = _W_OFF[li], _B_OFF[li]
                # fc5 declares 9 inputs but only receives fc4's 8 outputs; the
                # missing 9th input is zero, so its weight row is never used.
                k_used = min(fin, len(h))
                nxt = []
                for j in range(fout):
                    acc = h[0] * p[w0 + j]
                    for k in range(1, k_used):
                        acc = acc + h[k] * p[w0 + k * fout + j]
                    acc = acc + p[b0 + j]
                    if li + 1 < len(LAYER_DIMS):       # ReLU on fc1..fc4 only
                        acc = jnp.maximum(acc, 0.0)
                    nxt.append(acc)
                h = nxt
            for j in range(OUT_FEATURES):
                o_ref[j, pl.ds(r0, chunk_rows), :] = h[j]

    return kernel


def pack_params(params):
    """Flatten per-layer (w [in, out], b [out]) into one f32 vector for SMEM.

    Done ONCE at init time.  NOTE: weights must be [in_features, out_features];
    PyTorch's nn.Linear.weight is stored [out_features, in_features] and must
    be transposed when porting real torch weights.
    """
    assert len(params) == len(LAYER_DIMS)
    parts = []
    for (w, b), (fin, fout) in zip(params, LAYER_DIMS):
        w = jnp.asarray(w, jnp.float32)
        b = jnp.asarray(b, jnp.float32)
        assert w.shape == (fin, fout), (w.shape, (fin, fout))
        assert b.shape == (fout,), (b.shape, fout)
        parts.append(w.reshape(-1))
        parts.append(b.reshape(-1))
    return jnp.concatenate(parts)


def _tiling(n):
    """Pick (tile_rows, n_rows_pad, chunk_rows) for a batch of n samples."""
    n_rows = _round_up(max(1, _cdiv(n, LANE)), SUB)
    if n_rows > TILE_ROWS_MAX:
        tile_rows = TILE_ROWS_MAX
    elif n_rows > SUB:
        # Guarantee >= 2 grid steps so "parallel" shards across v7x's two TCs.
        tile_rows = _round_up(_cdiv(n_rows, 2), SUB)
    else:
        tile_rows = SUB
    n_rows_pad = _round_up(n_rows, tile_rows)
    chunk_rows = 16 if tile_rows % 16 == 0 else SUB
    return tile_rows, n_rows_pad, chunk_rows


@jax.jit
def decoder_net_block(x, packed_params):
    """x: [N, 1] (or [N]) float32; packed_params from pack_params. Returns [N, 10]."""
    n = x.shape[0]
    tile_rows, n_rows_pad, chunk_rows = _tiling(n)
    n_pad = n_rows_pad * LANE

    xf = jnp.asarray(x, jnp.float32).reshape(-1)
    if n_pad != n:
        xf = jnp.pad(xf, (0, n_pad - n))
    x2d = xf.reshape(n_rows_pad, LANE)

    out = pl.pallas_call(
        _make_kernel(tile_rows, chunk_rows),
        out_shape=jax.ShapeDtypeStruct((OUT_FEATURES, n_rows_pad, LANE), jnp.float32),
        grid_spec=pltpu.PrefetchScalarGridSpec(
            num_scalar_prefetch=0,
            grid=(n_rows_pad // tile_rows,),
            in_specs=[
                pl.BlockSpec((tile_rows, LANE), lambda i: (i, 0)),      # activations
                pl.BlockSpec(memory_space=pltpu.MemorySpace.SMEM),      # params (resident, ~1 KiB)
            ],
            out_specs=pl.BlockSpec((OUT_FEATURES, tile_rows, LANE),
                                   lambda i: (0, i, 0)),
        ),
        compiler_params=pltpu.CompilerParams(
            dimension_semantics=("parallel",),   # batch tiles shard across TCs on v7x
        ),
    )(x2d, packed_params)

    # Feature-major [10, n_pad] -> the module's [N, 10].
    out = out.reshape(OUT_FEATURES, n_pad)[:, :n]
    return out.T


def init_params(key):
    """Deterministic init mimicking PyTorch Linear default U(-1/sqrt(in), 1/sqrt(in))."""
    params = []
    for (fin, fout) in LAYER_DIMS:
        key, kw, kb = jax.random.split(key, 3)
        bound = 1.0 / jnp.sqrt(jnp.float32(fin))
        w = jax.random.uniform(kw, (fin, fout), jnp.float32, -bound, bound)
        b = jax.random.uniform(kb, (fout,), jnp.float32, -bound, bound)
        params.append((w, b))
    return params


def _reference(x, params):
    """Plain-JAX reference of the (repaired) forward for a sanity check."""
    h = jnp.asarray(x, jnp.float32)
    for i, (w, b) in enumerate(params):
        fin = w.shape[0]
        if h.shape[-1] < fin:                 # fc4(8) -> fc5(expects 9): zero-pad
            h = jnp.pad(h, ((0, 0), (0, fin - h.shape[-1])))
        h = h @ w + b
        if i < len(params) - 1:
            h = jnp.maximum(h, 0.0)
    return h


if __name__ == "__main__":
    key = jax.random.PRNGKey(0)
    key, kx1, kx2 = jax.random.split(key, 3)

    params = init_params(key)
    packed = pack_params(params)              # packed once, reused per call

    # Small shape consistent with the module (fc1 in_features == 1).
    N1 = 8
    x1 = jax.random.normal(kx1, (N1, 1), jnp.float32)
    y1 = jax.block_until_ready(decoder_net_block(x1, packed))
    assert y1.shape == (N1, OUT_FEATURES), y1.shape
    assert jnp.allclose(y1, _reference(x1, params), atol=1e-5, rtol=1e-5), \
        "mismatch vs reference (N=8)"

    # Multi-tile path (grid of 2, padded batch) to exercise the pipeline.
    N2 = 2500
    x2 = jax.random.normal(kx2, (N2, 1), jnp.float32)
    y2 = jax.block_until_ready(decoder_net_block(x2, packed))
    assert y2.shape == (N2, OUT_FEATURES), y2.shape
    assert jnp.allclose(y2, _reference(x2, params), atol=1e-5, rtol=1e-5), \
        "mismatch vs reference (N=2500)"

    print("KERNEL_OK")
</pallas_src>

<mosaic_0001>
module attributes {stable_mosaic.version = 11 : i64} {
  func.func @kernel(%arg0: i32, %arg1: memref<8x128xf32, #tpu.memory_space<vmem>>, %arg2: memref<202xf32, #tpu.memory_space<smem>>, %arg3: memref<10x8x128xf32, #tpu.memory_space<vmem>>) attributes {dimension_semantics = [#tpu.dimension_semantics<parallel>], iteration_bounds = array<i64: 1>, scalar_prefetch = 0 : i64, scratch_operands = 0 : i64, tpu.core_type = #tpu.core_type<tc>, window_params = [{transform_indices = @transform_0, window_bounds = array<i64: 8, 128>}, {transform_indices = @transform_1, window_bounds = array<i64: 202>}, {transform_indices = @transform_2, window_bounds = array<i64: 10, 8, 128>}]} {
    %c0 = arith.constant 0 : index
    %0 = memref.load %arg2[%c0] : memref<202xf32, #tpu.memory_space<smem>>
    %c1 = arith.constant 1 : index
    %1 = memref.load %arg2[%c1] : memref<202xf32, #tpu.memory_space<smem>>
    %c2 = arith.constant 2 : index
    %2 = memref.load %arg2[%c2] : memref<202xf32, #tpu.memory_space<smem>>
    %c3 = arith.constant 3 : index
    %3 = memref.load %arg2[%c3] : memref<202xf32, #tpu.memory_space<smem>>
    %c4 = arith.constant 4 : index
    %4 = memref.load %arg2[%c4] : memref<202xf32, #tpu.memory_space<smem>>
    %c5 = arith.constant 5 : index
    %5 = memref.load %arg2[%c5] : memref<202xf32, #tpu.memory_space<smem>>
    %c6 = arith.constant 6 : index
    %6 = memref.load %arg2[%c6] : memref<202xf32, #tpu.memory_space<smem>>
    %c7 = arith.constant 7 : index
    %7 = memref.load %arg2[%c7] : memref<202xf32, #tpu.memory_space<smem>>
    %c8 = arith.constant 8 : index
    %8 = memref.load %arg2[%c8] : memref<202xf32, #tpu.memory_space<smem>>
    %c9 = arith.constant 9 : index
    %9 = memref.load %arg2[%c9] : memref<202xf32, #tpu.memory_space<smem>>
    %c10 = arith.constant 10 : index
    %10 = memref.load %arg2[%c10] : memref<202xf32, #tpu.memory_space<smem>>
    %c11 = arith.constant 11 : index
    %11 = memref.load %arg2[%c11] : memref<202xf32, #tpu.memory_space<smem>>
    %c12 = arith.constant 12 : index
    %12 = memref.load %arg2[%c12] : memref<202xf32, #tpu.memory_space<smem>>
    %c13 = arith.constant 13 : index
    %13 = memref.load %arg2[%c13] : memref<202xf32, #tpu.memory_space<smem>>
    %c14 = arith.constant 14 : index
    %14 = memref.load %arg2[%c14] : memref<202xf32, #tpu.memory_space<smem>>
    %c15 = arith.constant 15 : index
    %15 = memref.load %arg2[%c15] : memref<202xf32, #tpu.memory_space<smem>>
    %c16 = arith.constant 16 : index
    %16 = memref.load %arg2[%c16] : memref<202xf32, #tpu.memory_space<smem>>
    %c17 = arith.constant 17 : index
    %17 = memref.load %arg2[%c17] : memref<202xf32, #tpu.memory_space<smem>>
    %c18 = arith.constant 18 : index
    %18 = memref.load %arg2[%c18] : memref<202xf32, #tpu.memory_space<smem>>
    %c19 = arith.constant 19 : index
    %19 = memref.load %arg2[%c19] : memref<202xf32, #tpu.memory_space<smem>>
    %c20 = arith.constant 20 : index
    %20 = memref.load %arg2[%c20] : memref<202xf32, #tpu.memory_space<smem>>
    %c21 = arith.constant 21 : index
    %21 = memref.load %arg2[%c21] : memref<202xf32, #tpu.memory_space<smem>>
    %c22 = arith.constant 22 : index
    %22 = memref.load %arg2[%c22] : memref<202xf32, #tpu.memory_space<smem>>
    %c23 = arith.constant 23 : index
    %23 = memref.load %arg2[%c23] : memref<202xf32, #tpu.memory_space<smem>>
    %c24 = arith.constant 24 : index
    %24 = memref.load %arg2[%c24] : memref<202xf32, #tpu.memory_space<smem>>
    %c25 = arith.constant 25 : index
    %25 = memref.load %arg2[%c25] : memref<202xf32, #tpu.memory_space<smem>>
    %c26 = arith.constant 26 : index
    %26 = memref.load %arg2[%c26] : memref<202xf32, #tpu.memory_space<smem>>
    %c27 = arith.constant 27 : index
    %27 = memref.load %arg2[%c27] : memref<202xf32, #tpu.memory_space<smem>>
    %c28 = arith.constant 28 : index
    %28 = memref.load %arg2[%c28] : memref<202xf32, #tpu.memory_space<smem>>
    %c29 = arith.constant 29 : index
    %29 = memref.load %arg2[%c29] : memref<202xf32, #tpu.memory_space<smem>>
    %c30 = arith.constant 30 : index
    %30 = memref.load %arg2[%c30] : memref<202xf32, #tpu.memory_space<smem>>
    %c31 = arith.constant 31 : index
    %31 = memref.load %arg2[%c31] : memref<202xf32, #tpu.memory_space<smem>>
    %c32 = arith.constant 32 : index
    %32 = memref.load %arg2[%c32] : memref<202xf32, #tpu.memory_space<smem>>
    %c33 = arith.constant 33 : index
    %33 = memref.load %arg2[%c33] : memref<202xf32, #tpu.memory_space<smem>>
    %c34 = arith.constant 34 : index
    %34 = memref.load %arg2[%c34] : memref<202xf32, #tpu.memory_space<smem>>
    %c35 = arith.constant 35 : index
    %35 = memref.load %arg2[%c35] : memref<202xf32, #tpu.memory_space<smem>>
    %c36 = arith.constant 36 : index
    %36 = memref.load %arg2[%c36] : memref<202xf32, #tpu.memory_space<smem>>
    %c37 = arith.constant 37 : index
    %37 = memref.load %arg2[%c37] : memref<202xf32, #tpu.memory_space<smem>>
    %c38 = arith.constant 38 : index
    %38 = memref.load %arg2[%c38] : memref<202xf32, #tpu.memory_space<smem>>
    %c39 = arith.constant 39 : index
    %39 = memref.load %arg2[%c39] : memref<202xf32, #tpu.memory_space<smem>>
    %c40 = arith.constant 40 : index
    %40 = memref.load %arg2[%c40] : memref<202xf32, #tpu.memory_space<smem>>
    %c41 = arith.constant 41 : index
    %41 = memref.load %arg2[%c41] : memref<202xf32, #tpu.memory_space<smem>>
    %c42 = arith.constant 42 : index
    %42 = memref.load %arg2[%c42] : memref<202xf32, #tpu.memory_space<smem>>
    %c43 = arith.constant 43 : index
    %43 = memref.load %arg2[%c43] : memref<202xf32, #tpu.memory_space<smem>>
    %c44 = arith.constant 44 : index
    %44 = memref.load %arg2[%c44] : memref<202xf32, #tpu.memory_space<smem>>
    %c45 = arith.constant 45 : index
    %45 = memref.load %arg2[%c45] : memref<202xf32, #tpu.memory_space<smem>>
    %c46 = arith.constant 46 : index
    %46 = memref.load %arg2[%c46] : memref<202xf32, #tpu.memory_space<smem>>
    %c47 = arith.constant 47 : index
    %47 = memref.load %arg2[%c47] : memref<202xf32, #tpu.memory_space<smem>>
    %c48 = arith.constant 48 : index
    %48 = memref.load %arg2[%c48] : memref<202xf32, #tpu.memory_space<smem>>
    %c49 = arith.constant 49 : index
    %49 = memref.load %arg2[%c49] : memref<202xf32, #tpu.memory_space<smem>>
    %c50 = arith.constant 50 : index
    %50 = memref.load %arg2[%c50] : memref<202xf32, #tpu.memory_space<smem>>
    %c51 = arith.constant 51 : index
    %51 = memref.load %arg2[%c51] : memref<202xf32, #tpu.memory_space<smem>>
    %c52 = arith.constant 52 : index
    %52 = memref.load %arg2[%c52] : memref<202xf32, #tpu.memory_space<smem>>
    %c53 = arith.constant 53 : index
    %53 = memref.load %arg2[%c53] : memref<202xf32, #tpu.memory_space<smem>>
    %c54 = arith.constant 54 : index
    %54 = memref.load %arg2[%c54] : memref<202xf32, #tpu.memory_space<smem>>
    %c55 = arith.constant 55 : index
    %55 = memref.load %arg2[%c55] : memref<202xf32, #tpu.memory_space<smem>>
    %c56 = arith.constant 56 : index
    %56 = memref.load %arg2[%c56] : memref<202xf32, #tpu.memory_space<smem>>
    %c57 = arith.constant 57 : index
    %57 = memref.load %arg2[%c57] : memref<202xf32, #tpu.memory_space<smem>>
    %c58 = arith.constant 58 : index
    %58 = memref.load %arg2[%c58] : memref<202xf32, #tpu.memory_space<smem>>
    %c59 = arith.constant 59 : index
    %59 = memref.load %arg2[%c59] : memref<202xf32, #tpu.memory_space<smem>>
    %c60 = arith.constant 60 : index
    %60 = memref.load %arg2[%c60] : memref<202xf32, #tpu.memory_space<smem>>
    %c61 = arith.constant 61 : index
    %61 = memref.load %arg2[%c61] : memref<202xf32, #tpu.memory_space<smem>>
    %c62 = arith.constant 62 : index
    %62 = memref.load %arg2[%c62] : memref<202xf32, #tpu.memory_space<smem>>
    %c63 = arith.constant 63 : index
    %63 = memref.load %arg2[%c63] : memref<202xf32, #tpu.memory_space<smem>>
    %c64 = arith.constant 64 : index
    %64 = memref.load %arg2[%c64] : memref<202xf32, #tpu.memory_space<smem>>
    %c65 = arith.constant 65 : index
    %65 = memref.load %arg2[%c65] : memref<202xf32, #tpu.memory_space<smem>>
    %c66 = arith.constant 66 : index
    %66 = memref.load %arg2[%c66] : memref<202xf32, #tpu.memory_space<smem>>
    %c67 = arith.constant 67 : index
    %67 = memref.load %arg2[%c67] : memref<202xf32, #tpu.memory_space<smem>>
    %c68 = arith.constant 68 : index
    %68 = memref.load %arg2[%c68] : memref<202xf32, #tpu.memory_space<smem>>
    %c69 = arith.constant 69 : index
    %69 = memref.load %arg2[%c69] : memref<202xf32, #tpu.memory_space<smem>>
    %c70 = arith.constant 70 : index
    %70 = memref.load %arg2[%c70] : memref<202xf32, #tpu.memory_space<smem>>
    %c71 = arith.constant 71 : index
    %71 = memref.load %arg2[%c71] : memref<202xf32, #tpu.memory_space<smem>>
    %c72 = arith.constant 72 : index
    %72 = memref.load %arg2[%c72] : memref<202xf32, #tpu.memory_space<smem>>
    %c73 = arith.constant 73 : index
    %73 = memref.load %arg2[%c73] : memref<202xf32, #tpu.memory_space<smem>>
    %c74 = arith.constant 74 : index
    %74 = memref.load %arg2[%c74] : memref<202xf32, #tpu.memory_space<smem>>
    %c75 = arith.constant 75 : index
    %75 = memref.load %arg2[%c75] : memref<202xf32, #tpu.memory_space<smem>>
    %c76 = arith.constant 76 : index
    %76 = memref.load %arg2[%c76] : memref<202xf32, #tpu.memory_space<smem>>
    %c77 = arith.constant 77 : index
    %77 = memref.load %arg2[%c77] : memref<202xf32, #tpu.memory_space<smem>>
    %c78 = arith.constant 78 : index
    %78 = memref.load %arg2[%c78] : memref<202xf32, #tpu.memory_space<smem>>
    %c79 = arith.constant 79 : index
    %79 = memref.load %arg2[%c79] : memref<202xf32, #tpu.memory_space<smem>>
    %c80 = arith.constant 80 : index
    %80 = memref.load %arg2[%c80] : memref<202xf32, #tpu.memory_space<smem>>
    %c81 = arith.constant 81 : index
    %81 = memref.load %arg2[%c81] : memref<202xf32, #tpu.memory_space<smem>>
    %c82 = arith.constant 82 : index
    %82 = memref.load %arg2[%c82] : memref<202xf32, #tpu.memory_space<smem>>
    %c83 = arith.constant 83 : index
    %83 = memref.load %arg2[%c83] : memref<202xf32, #tpu.memory_space<smem>>
    %c84 = arith.constant 84 : index
    %84 = memref.load %arg2[%c84] : memref<202xf32, #tpu.memory_space<smem>>
    %c85 = arith.constant 85 : index
    %85 = memref.load %arg2[%c85] : memref<202xf32, #tpu.memory_space<smem>>
    %c86 = arith.constant 86 : index
    %86 = memref.load %arg2[%c86] : memref<202xf32, #tpu.memory_space<smem>>
    %c87 = arith.constant 87 : index
    %87 = memref.load %arg2[%c87] : memref<202xf32, #tpu.memory_space<smem>>
    %c88 = arith.constant 88 : index
    %88 = memref.load %arg2[%c88] : memref<202xf32, #tpu.memory_space<smem>>
    %c89 = arith.constant 89 : index
    %89 = memref.load %arg2[%c89] : memref<202xf32, #tpu.memory_space<smem>>
    %c90 = arith.constant 90 : index
    %90 = memref.load %arg2[%c90] : memref<202xf32, #tpu.memory_space<smem>>
    %c91 = arith.constant 91 : index
    %91 = memref.load %arg2[%c91] : memref<202xf32, #tpu.memory_space<smem>>
    %c92 = arith.constant 92 : index
    %92 = memref.load %arg2[%c92] : memref<202xf32, #tpu.memory_space<smem>>
    %c93 = arith.constant 93 : index
    %93 = memref.load %arg2[%c93] : memref<202xf32, #tpu.memory_space<smem>>
    %c94 = arith.constant 94 : index
    %94 = memref.load %arg2[%c94] : memref<202xf32, #tpu.memory_space<smem>>
    %c95 = arith.constant 95 : index
    %95 = memref.load %arg2[%c95] : memref<202xf32, #tpu.memory_space<smem>>
    %c96 = arith.constant 96 : index
    %96 = memref.load %arg2[%c96] : memref<202xf32, #tpu.memory_space<smem>>
    %c97 = arith.constant 97 : index
    %97 = memref.load %arg2[%c97] : memref<202xf32, #tpu.memory_space<smem>>
    %c98 = arith.constant 98 : index
    %98 = memref.load %arg2[%c98] : memref<202xf32, #tpu.memory_space<smem>>
    %c99 = arith.constant 99 : index
    %99 = memref.load %arg2[%c99] : memref<202xf32, #tpu.memory_space<smem>>
    %c100 = arith.constant 100 : index
    %100 = memref.load %arg2[%c100] : memref<202xf32, #tpu.memory_space<smem>>
    %c101 = arith.constant 101 : index
    %101 = memref.load %arg2[%c101] : memref<202xf32, #tpu.memory_space<smem>>
    %c102 = arith.constant 102 : index
    %102 = memref.load %arg2[%c102] : memref<202xf32, #tpu.memory_space<smem>>
    %c103 = arith.constant 103 : index
    %103 = memref.load %arg2[%c103] : memref<202xf32, #tpu.memory_space<smem>>
    %c104 = arith.constant 104 : index
    %104 = memref.load %arg2[%c104] : memref<202xf32, #tpu.memory_space<smem>>
    %c105 = arith.constant 105 : index
    %105 = memref.load %arg2[%c105] : memref<202xf32, #tpu.memory_space<smem>>
    %c106 = arith.constant 106 : index
    %106 = memref.load %arg2[%c106] : memref<202xf32, #tpu.memory_space<smem>>
    %c107 = arith.constant 107 : index
    %107 = memref.load %arg2[%c107] : memref<202xf32, #tpu.memory_space<smem>>
    %c108 = arith.constant 108 : index
    %108 = memref.load %arg2[%c108] : memref<202xf32, #tpu.memory_space<smem>>
    %c109 = arith.constant 109 : index
    %109 = memref.load %arg2[%c109] : memref<202xf32, #tpu.memory_space<smem>>
    %c110 = arith.constant 110 : index
    %110 = memref.load %arg2[%c110] : memref<202xf32, #tpu.memory_space<smem>>
    %c111 = arith.constant 111 : index
    %111 = memref.load %arg2[%c111] : memref<202xf32, #tpu.memory_space<smem>>
    %c112 = arith.constant 112 : index
    %112 = memref.load %arg2[%c112] : memref<202xf32, #tpu.memory_space<smem>>
    %c113 = arith.constant 113 : index
    %113 = memref.load %arg2[%c113] : memref<202xf32, #tpu.memory_space<smem>>
    %c114 = arith.constant 114 : index
    %114 = memref.load %arg2[%c114] : memref<202xf32, #tpu.memory_space<smem>>
    %c115 = arith.constant 115 : index
    %115 = memref.load %arg2[%c115] : memref<202xf32, #tpu.memory_space<smem>>
    %c116 = arith.constant 116 : index
    %116 = memref.load %arg2[%c116] : memref<202xf32, #tpu.memory_space<smem>>
    %c117 = arith.constant 117 : index
    %117 = memref.load %arg2[%c117] : memref<202xf32, #tpu.memory_space<smem>>
    %c118 = arith.constant 118 : index
    %118 = memref.load %arg2[%c118] : memref<202xf32, #tpu.memory_space<smem>>
    %c119 = arith.constant 119 : index
    %119 = memref.load %arg2[%c119] : memref<202xf32, #tpu.memory_space<smem>>
    %c120 = arith.constant 120 : index
    %120 = memref.load %arg2[%c120] : memref<202xf32, #tpu.memory_space<smem>>
    %c121 = arith.constant 121 : index
    %121 = memref.load %arg2[%c121] : memref<202xf32, #tpu.memory_space<smem>>
    %c122 = arith.constant 122 : index
    %122 = memref.load %arg2[%c122] : memref<202xf32, #tpu.memory_space<smem>>
    %c123 = arith.constant 123 : index
    %123 = memref.load %arg2[%c123] : memref<202xf32, #tpu.memory_space<smem>>
    %c124 = arith.constant 124 : index
    %124 = memref.load %arg2[%c124] : memref<202xf32, #tpu.memory_space<smem>>
    %c125 = arith.constant 125 : index
    %125 = memref.load %arg2[%c125] : memref<202xf32, #tpu.memory_space<smem>>
    %c126 = arith.constant 126 : index
    %126 = memref.load %arg2[%c126] : memref<202xf32, #tpu.memory_space<smem>>
    %c127 = arith.constant 127 : index
    %127 = memref.load %arg2[%c127] : memref<202xf32, #tpu.memory_space<smem>>
    %c128 = arith.constant 128 : index
    %128 = memref.load %arg2[%c128] : memref<202xf32, #tpu.memory_space<smem>>
    %c129 = arith.constant 129 : index
    %129 = memref.load %arg2[%c129] : memref<202xf32, #tpu.memory_space<smem>>
    %c130 = arith.constant 130 : index
    %130 = memref.load %arg2[%c130] : memref<202xf32, #tpu.memory_space<smem>>
    %c131 = arith.constant 131 : index
    %131 = memref.load %arg2[%c131] : memref<202xf32, #tpu.memory_space<smem>>
    %c132 = arith.constant 132 : index
    %132 = memref.load %arg2[%c132] : memref<202xf32, #tpu.memory_space<smem>>
    %c133 = arith.constant 133 : index
    %133 = memref.load %arg2[%c133] : memref<202xf32, #tpu.memory_space<smem>>
    %c134 = arith.constant 134 : index
    %134 = memref.load %arg2[%c134] : memref<202xf32, #tpu.memory_space<smem>>
    %c135 = arith.constant 135 : index
    %135 = memref.load %arg2[%c135] : memref<202xf32, #tpu.memory_space<smem>>
    %c136 = arith.constant 136 : index
    %136 = memref.load %arg2[%c136] : memref<202xf32, #tpu.memory_space<smem>>
    %c137 = arith.constant 137 : index
    %137 = memref.load %arg2[%c137] : memref<202xf32, #tpu.memory_space<smem>>
    %c138 = arith.constant 138 : index
    %138 = memref.load %arg2[%c138] : memref<202xf32, #tpu.memory_space<smem>>
    %c139 = arith.constant 139 : index
    %139 = memref.load %arg2[%c139] : memref<202xf32, #tpu.memory_space<smem>>
    %c140 = arith.constant 140 : index
    %140 = memref.load %arg2[%c140] : memref<202xf32, #tpu.memory_space<smem>>
    %c141 = arith.constant 141 : index
    %141 = memref.load %arg2[%c141] : memref<202xf32, #tpu.memory_space<smem>>
    %c142 = arith.constant 142 : index
    %142 = memref.load %arg2[%c142] : memref<202xf32, #tpu.memory_space<smem>>
    %c143 = arith.constant 143 : index
    %143 = memref.load %arg2[%c143] : memref<202xf32, #tpu.memory_space<smem>>
    %c144 = arith.constant 144 : index
    %144 = memref.load %arg2[%c144] : memref<202xf32, #tpu.memory_space<smem>>
    %c145 = arith.constant 145 : index
    %145 = memref.load %arg2[%c145] : memref<202xf32, #tpu.memory_space<smem>>
    %c146 = arith.constant 146 : index
    %146 = memref.load %arg2[%c146] : memref<202xf32, #tpu.memory_space<smem>>
    %c147 = arith.constant 147 : index
    %147 = memref.load %arg2[%c147] : memref<202xf32, #tpu.memory_space<smem>>
    %c148 = arith.constant 148 : index
    %148 = memref.load %arg2[%c148] : memref<202xf32, #tpu.memory_space<smem>>
    %c149 = arith.constant 149 : index
    %149 = memref.load %arg2[%c149] : memref<202xf32, #tpu.memory_space<smem>>
    %c150 = arith.constant 150 : index
    %150 = memref.load %arg2[%c150] : memref<202xf32, #tpu.memory_space<smem>>
    %c151 = arith.constant 151 : index
    %151 = memref.load %arg2[%c151] : memref<202xf32, #tpu.memory_space<smem>>
    %c152 = arith.constant 152 : index
    %152 = memref.load %arg2[%c152] : memref<202xf32, #tpu.memory_space<smem>>
    %c153 = arith.constant 153 : index
    %153 = memref.load %arg2[%c153] : memref<202xf32, #tpu.memory_space<smem>>
    %c154 = arith.constant 154 : index
    %154 = memref.load %arg2[%c154] : memref<202xf32, #tpu.memory_space<smem>>
    %c155 = arith.constant 155 : index
    %155 = memref.load %arg2[%c155] : memref<202xf32, #tpu.memory_space<smem>>
    %c156 = arith.constant 156 : index
    %156 = memref.load %arg2[%c156] : memref<202xf32, #tpu.memory_space<smem>>
    %c157 = arith.constant 157 : index
    %157 = memref.load %arg2[%c157] : memref<202xf32, #tpu.memory_space<smem>>
    %c158 = arith.constant 158 : index
    %158 = memref.load %arg2[%c158] : memref<202xf32, #tpu.memory_space<smem>>
    %c159 = arith.constant 159 : index
    %159 = memref.load %arg2[%c159] : memref<202xf32, #tpu.memory_space<smem>>
    %c160 = arith.constant 160 : index
    %160 = memref.load %arg2[%c160] : memref<202xf32, #tpu.memory_space<smem>>
    %c161 = arith.constant 161 : index
    %161 = memref.load %arg2[%c161] : memref<202xf32, #tpu.memory_space<smem>>
    %c162 = arith.constant 162 : index
    %162 = memref.load %arg2[%c162] : memref<202xf32, #tpu.memory_space<smem>>
    %c163 = arith.constant 163 : index
    %163 = memref.load %arg2[%c163] : memref<202xf32, #tpu.memory_space<smem>>
    %c164 = arith.constant 164 : index
    %164 = memref.load %arg2[%c164] : memref<202xf32, #tpu.memory_space<smem>>
    %c165 = arith.constant 165 : index
    %165 = memref.load %arg2[%c165] : memref<202xf32, #tpu.memory_space<smem>>
    %c166 = arith.constant 166 : index
    %166 = memref.load %arg2[%c166] : memref<202xf32, #tpu.memory_space<smem>>
    %c167 = arith.constant 167 : index
    %167 = memref.load %arg2[%c167] : memref<202xf32, #tpu.memory_space<smem>>
    %c168 = arith.constant 168 : index
    %168 = memref.load %arg2[%c168] : memref<202xf32, #tpu.memory_space<smem>>
    %c169 = arith.constant 169 : index
    %169 = memref.load %arg2[%c169] : memref<202xf32, #tpu.memory_space<smem>>
    %c170 = arith.constant 170 : index
    %170 = memref.load %arg2[%c170] : memref<202xf32, #tpu.memory_space<smem>>
    %c171 = arith.constant 171 : index
    %171 = memref.load %arg2[%c171] : memref<202xf32, #tpu.memory_space<smem>>
    %c172 = arith.constant 172 : index
    %172 = memref.load %arg2[%c172] : memref<202xf32, #tpu.memory_space<smem>>
    %c173 = arith.constant 173 : index
    %173 = memref.load %arg2[%c173] : memref<202xf32, #tpu.memory_space<smem>>
    %c174 = arith.constant 174 : index
    %174 = memref.load %arg2[%c174] : memref<202xf32, #tpu.memory_space<smem>>
    %c175 = arith.constant 175 : index
    %175 = memref.load %arg2[%c175] : memref<202xf32, #tpu.memory_space<smem>>
    %c176 = arith.constant 176 : index
    %176 = memref.load %arg2[%c176] : memref<202xf32, #tpu.memory_space<smem>>
    %c177 = arith.constant 177 : index
    %177 = memref.load %arg2[%c177] : memref<202xf32, #tpu.memory_space<smem>>
    %c178 = arith.constant 178 : index
    %178 = memref.load %arg2[%c178] : memref<202xf32, #tpu.memory_space<smem>>
    %c179 = arith.constant 179 : index
    %179 = memref.load %arg2[%c179] : memref<202xf32, #tpu.memory_space<smem>>
    %c180 = arith.constant 180 : index
    %180 = memref.load %arg2[%c180] : memref<202xf32, #tpu.memory_space<smem>>
    %c181 = arith.constant 181 : index
    %181 = memref.load %arg2[%c181] : memref<202xf32, #tpu.memory_space<smem>>
    %c192 = arith.constant 192 : index
    %182 = memref.load %arg2[%c192] : memref<202xf32, #tpu.memory_space<smem>>
    %c193 = arith.constant 193 : index
    %183 = memref.load %arg2[%c193] : memref<202xf32, #tpu.memory_space<smem>>
    %c194 = arith.constant 194 : index
    %184 = memref.load %arg2[%c194] : memref<202xf32, #tpu.memory_space<smem>>
    %c195 = arith.constant 195 : index
    %185 = memref.load %arg2[%c195] : memref<202xf32, #tpu.memory_space<smem>>
    %c196 = arith.constant 196 : index
    %186 = memref.load %arg2[%c196] : memref<202xf32, #tpu.memory_space<smem>>
    %c197 = arith.constant 197 : index
    %187 = memref.load %arg2[%c197] : memref<202xf32, #tpu.memory_space<smem>>
    %c198 = arith.constant 198 : index
    %188 = memref.load %arg2[%c198] : memref<202xf32, #tpu.memory_space<smem>>
    %c199 = arith.constant 199 : index
    %189 = memref.load %arg2[%c199] : memref<202xf32, #tpu.memory_space<smem>>
    %c200 = arith.constant 200 : index
    %190 = memref.load %arg2[%c200] : memref<202xf32, #tpu.memory_space<smem>>
    %c201 = arith.constant 201 : index
    %191 = memref.load %arg2[%c201] : memref<202xf32, #tpu.memory_space<smem>>
    %c0_0 = arith.constant 0 : index
    %c0_1 = arith.constant 0 : index
    %192 = vector.load %arg1[%c0_0, %c0_1] : memref<8x128xf32, #tpu.memory_space<vmem>>, vector<8x128xf32>
    %193 = vector.broadcast %0 : f32 to vector<8x128xf32>
    %194 = arith.mulf %192, %193 : vector<8x128xf32>
    %195 = vector.broadcast %2 : f32 to vector<8x128xf32>
    %196 = arith.addf %194, %195 : vector<8x128xf32>
    %cst = arith.constant 0.000000e+00 : f32
    %197 = vector.broadcast %cst : f32 to vector<8x128xf32>
    %198 = arith.maximumf %196, %197 : vector<8x128xf32>
    %199 = vector.broadcast %1 : f32 to vector<8x128xf32>
    %200 = arith.mulf %192, %199 : vector<8x128xf32>
    %201 = vector.broadcast %3 : f32 to vector<8x128xf32>
    %202 = arith.addf %200, %201 : vector<8x128xf32>
    %cst_2 = arith.constant 0.000000e+00 : f32
    %203 = vector.broadcast %cst_2 : f32 to vector<8x128xf32>
    %204 = arith.maximumf %202, %203 : vector<8x128xf32>
    %205 = vector.broadcast %4 : f32 to vector<8x128xf32>
    %206 = arith.mulf %198, %205 : vector<8x128xf32>
    %207 = vector.broadcast %8 : f32 to vector<8x128xf32>
    %208 = arith.mulf %204, %207 : vector<8x128xf32>
    %209 = arith.addf %206, %208 : vector<8x128xf32>
    %210 = vector.broadcast %12 : f32 to vector<8x128xf32>
    %211 = arith.addf %209, %210 : vector<8x128xf32>
    %cst_3 = arith.constant 0.000000e+00 : f32
    %212 = vector.broadcast %cst_3 : f32 to vector<8x128xf32>
    %213 = arith.maximumf %211, %212 : vector<8x128xf32>
    %214 = vector.broadcast %5 : f32 to vector<8x128xf32>
    %215 = arith.mulf %198, %214 : vector<8x128xf32>
    %216 = vector.broadcast %9 : f32 to vector<8x128xf32>
    %217 = arith.mulf %204, %216 : vector<8x128xf32>
    %218 = arith.addf %215, %217 : vector<8x128xf32>
    %219 = vector.broadcast %13 : f32 to vector<8x128xf32>
    %220 = arith.addf %218, %219 : vector<8x128xf32>
    %cst_4 = arith.constant 0.000000e+00 : f32
    %221 = vector.broadcast %cst_4 : f32 to vector<8x128xf32>
    %222 = arith.maximumf %220, %221 : vector<8x128xf32>
    %223 = vector.broadcast %6 : f32 to vector<8x128xf32>
    %224 = arith.mulf %198, %223 : vector<8x128xf32>
    %225 = vector.broadcast %10 : f32 to vector<8x128xf32>
    %226 = arith.mulf %204, %225 : vector<8x128xf32>
    %227 = arith.addf %224, %226 : vector<8x128xf32>
    %228 = vector.broadcast %14 : f32 to vector<8x128xf32>
    %229 = arith.addf %227, %228 : vector<8x128xf32>
    %cst_5 = arith.constant 0.000000e+00 : f32
    %230 = vector.broadcast %cst_5 : f32 to vector<8x128xf32>
    %231 = arith.maximumf %229, %230 : vector<8x128xf32>
    %232 = vector.broadcast %7 : f32 to vector<8x128xf32>
    %233 = arith.mulf %198, %232 : vector<8x128xf32>
    %234 = vector.broadcast %11 : f32 to vector<8x128xf32>
    %235 = arith.mulf %204, %234 : vector<8x128xf32>
    %236 = arith.addf %233, %235 : vector<8x128xf32>
    %237 = vector.broadcast %15 : f32 to vector<8x128xf32>
    %238 = arith.addf %236, %237 : vector<8x128xf32>
    %cst_6 = arith.constant 0.000000e+00 : f32
    %239 = vector.broadcast %cst_6 : f32 to vector<8x128xf32>
    %240 = arith.maximumf %238, %239 : vector<8x128xf32>
    %241 = vector.broadcast %16 : f32 to vector<8x128xf32>
    %242 = arith.mulf %213, %241 : vector<8x128xf32>
    %243 = vector.broadcast %22 : f32 to vector<8x128xf32>
    %244 = arith.mulf %222, %243 : vector<8x128xf32>
    %245 = arith.addf %242, %244 : vector<8x128xf32>
    %246 = vector.broadcast %28 : f32 to vector<8x128xf32>
    %247 = arith.mulf %231, %246 : vector<8x128xf32>
    %248 = arith.addf %245, %247 : vector<8x128xf32>
    %249 = vector.broadcast %34 : f32 to vector<8x128xf32>
    %250 = arith.mulf %240, %249 : vector<8x128xf32>
    %251 = arith.addf %248, %250 : vector<8x128xf32>
    %252 = vector.broadcast %40 : f32 to vector<8x128xf32>
    %253 = arith.addf %251, %252 : vector<8x128xf32>
    %cst_7 = arith.constant 0.000000e+00 : f32
    %254 = vector.broadcast %cst_7 : f32 to vector<8x128xf32>
    %255 = arith.maximumf %253, %254 : vector<8x128xf32>
    %256 = vector.broadcast %17 : f32 to vector<8x128xf32>
    %257 = arith.mulf %213, %256 : vector<8x128xf32>
    %258 = vector.broadcast %23 : f32 to vector<8x128xf32>
    %259 = arith.mulf %222, %258 : vector<8x128xf32>
    %260 = arith.addf %257, %259 : vector<8x128xf32>
    %261 = vector.broadcast %29 : f32 to vector<8x128xf32>
    %262 = arith.mulf %231, %261 : vector<8x128xf32>
    %263 = arith.addf %260, %262 : vector<8x128xf32>
    %264 = vector.broadcast %35 : f32 to vector<8x128xf32>
    %265 = arith.mulf %240, %264 : vector<8x128xf32>
    %266 = arith.addf %263, %265 : vector<8x128xf32>
    %267 = vector.broadcast %41 : f32 to vector<8x128xf32>
    %268 = arith.addf %266, %267 : vector<8x128xf32>
    %cst_8 = arith.constant 0.000000e+00 : f32
    %269 = vector.broadcast %cst_8 : f32 to vector<8x128xf32>
    %270 = arith.maximumf %268, %269 : vector<8x128xf32>
    %271 = vector.broadcast %18 : f32 to vector<8x128xf32>
    %272 = arith.mulf %213, %271 : vector<8x128xf32>
    %273 = vector.broadcast %24 : f32 to vector<8x128xf32>
    %274 = arith.mulf %222, %273 : vector<8x128xf32>
    %275 = arith.addf %272, %274 : vector<8x128xf32>
    %276 = vector.broadcast %30 : f32 to vector<8x128xf32>
    %277 = arith.mulf %231, %276 : vector<8x128xf32>
    %278 = arith.addf %275, %277 : vector<8x128xf32>
    %279 = vector.broadcast %36 : f32 to vector<8x128xf32>
    %280 = arith.mulf %240, %279 : vector<8x128xf32>
    %281 = arith.addf %278, %280 : vector<8x128xf32>
    %282 = vector.broadcast %42 : f32 to vector<8x128xf32>
    %283 = arith.addf %281, %282 : vector<8x128xf32>
    %cst_9 = arith.constant 0.000000e+00 : f32
    %284 = vector.broadcast %cst_9 : f32 to vector<8x128xf32>
    %285 = arith.maximumf %283, %284 : vector<8x128xf32>
    %286 = vector.broadcast %19 : f32 to vector<8x128xf32>
    %287 = arith.mulf %213, %286 : vector<8x128xf32>
    %288 = vector.broadcast %25 : f32 to vector<8x128xf32>
    %289 = arith.mulf %222, %288 : vector<8x128xf32>
    %290 = arith.addf %287, %289 : vector<8x128xf32>
    %291 = vector.broadcast %31 : f32 to vector<8x128xf32>
    %292 = arith.mulf %231, %291 : vector<8x128xf32>
    %293 = arith.addf %290, %292 : vector<8x128xf32>
    %294 = vector.broadcast %37 : f32 to vector<8x128xf32>
    %295 = arith.mulf %240, %294 : vector<8x128xf32>
    %296 = arith.addf %293, %295 : vector<8x128xf32>
    %297 = vector.broadcast %43 : f32 to vector<8x128xf32>
    %298 = arith.addf %296, %297 : vector<8x128xf32>
    %cst_10 = arith.constant 0.000000e+00 : f32
    %299 = vector.broadcast %cst_10 : f32 to vector<8x128xf32>
    %300 = arith.maximumf %298, %299 : vector<8x128xf32>
    %301 = vector.broadcast %20 : f32 to vector<8x128xf32>
    %302 = arith.mulf %213, %301 : vector<8x128xf32>
    %303 = vector.broadcast %26 : f32 to vector<8x128xf32>
    %304 = arith.mulf %222, %303 : vector<8x128xf32>
    %305 = arith.addf %302, %304 : vector<8x128xf32>
    %306 = vector.broadcast %32 : f32 to vector<8x128xf32>
    %307 = arith.mulf %231, %306 : vector<8x128xf32>
    %308 = arith.addf %305, %307 : vector<8x128xf32>
    %309 = vector.broadcast %38 : f32 to vector<8x128xf32>
    %310 = arith.mulf %240, %309 : vector<8x128xf32>
    %311 = arith.addf %308, %310 : vector<8x128xf32>
    %312 = vector.broadcast %44 : f32 to vector<8x128xf32>
    %313 = arith.addf %311, %312 : vector<8x128xf32>
    %cst_11 = arith.constant 0.000000e+00 : f32
    %314 = vector.broadcast %cst_11 : f32 to vector<8x128xf32>
    %315 = arith.maximumf %313, %314 : vector<8x128xf32>
    %316 = vector.broadcast %21 : f32 to vector<8x128xf32>
    %317 = arith.mulf %213, %316 : vector<8x128xf32>
    %318 = vector.broadcast %27 : f32 to vector<8x128xf32>
    %319 = arith.mulf %222, %318 : vector<8x128xf32>
    %320 = arith.addf %317, %319 : vector<8x128xf32>
    %321 = vector.broadcast %33 : f32 to vector<8x128xf32>
    %322 = arith.mulf %231, %321 : vector<8x128xf32>
    %323 = arith.addf %320, %322 : vector<8x128xf32>
    %324 = vector.broadcast %39 : f32 to vector<8x128xf32>
    %325 = arith.mulf %240, %324 : vector<8x128xf32>
    %326 = arith.addf %323, %325 : vector<8x128xf32>
    %327 = vector.broadcast %45 : f32 to vector<8x128xf32>
    %328 = arith.addf %326, %327 : vector<8x128xf32>
    %cst_12 = arith.constant 0.000000e+00 : f32
    %329 = vector.broadcast %cst_12 : f32 to vector<8x128xf32>
    %330 = arith.maximumf %328, %329 : vector<8x128xf32>
    %331 = vector.broadcast %46 : f32 to vector<8x128xf32>
    %332 = arith.mulf %255, %331 : vector<8x128xf32>
    %333 = vector.broadcast %54 : f32 to vector<8x128xf32>
    %334 = arith.mulf %270, %333 : vector<8x128xf32>
    %335 = arith.addf %332, %334 : vector<8x128xf32>
    %336 = vector.broadcast %62 : f32 to vector<8x128xf32>
    %337 = arith.mulf %285, %336 : vector<8x128xf32>
    %338 = arith.addf %335, %337 : vector<8x128xf32>
    %339 = vector.broadcast %70 : f32 to vector<8x128xf32>
    %340 = arith.mulf %300, %339 : vector<8x128xf32>
    %341 = arith.addf %338, %340 : vector<8x128xf32>
    %342 = vector.broadcast %78 : f32 to vector<8x128xf32>
    %343 = arith.mulf %315, %342 : vector<8x128xf32>
    %344 = arith.addf %341, %343 : vector<8x128xf32>
    %345 = vector.broadcast %86 : f32 to vector<8x128xf32>
    %346 = arith.mulf %330, %345 : vector<8x128xf32>
    %347 = arith.addf %344, %346 : vector<8x128xf32>
    %348 = vector.broadcast %94 : f32 to vector<8x128xf32>
    %349 = arith.addf %347, %348 : vector<8x128xf32>
    %cst_13 = arith.constant 0.000000e+00 : f32
    %350 = vector.broadcast %cst_13 : f32 to vector<8x128xf32>
    %351 = arith.maximumf %349, %350 : vector<8x128xf32>
    %352 = vector.broadcast %47 : f32 to vector<8x128xf32>
    %353 = arith.mulf %255, %352 : vector<8x128xf32>
    %354 = vector.broadcast %55 : f32 to vector<8x128xf32>
    %355 = arith.mulf %270, %354 : vector<8x128xf32>
    %356 = arith.addf %353, %355 : vector<8x128xf32>
    %357 = vector.broadcast %63 : f32 to vector<8x128xf32>
    %358 = arith.mulf %285, %357 : vector<8x128xf32>
    %359 = arith.addf %356, %358 : vector<8x128xf32>
    %360 = vector.broadcast %71 : f32 to vector<8x128xf32>
    %361 = arith.mulf %300, %360 : vector<8x128xf32>
    %362 = arith.addf %359, %361 : vector<8x128xf32>
    %363 = vector.broadcast %79 : f32 to vector<8x128xf32>
    %364 = arith.mulf %315, %363 : vector<8x128xf32>
    %365 = arith.addf %362, %364 : vector<8x128xf32>
    %366 = vector.broadcast %87 : f32 to vector<8x128xf32>
    %367 = arith.mulf %330, %366 : vector<8x128xf32>
    %368 = arith.addf %365, %367 : vector<8x128xf32>
    %369 = vector.broadcast %95 : f32 to vector<8x128xf32>
    %370 = arith.addf %368, %369 : vector<8x128xf32>
    %cst_14 = arith.constant 0.000000e+00 : f32
    %371 = vector.broadcast %cst_14 : f32 to vector<8x128xf32>
    %372 = arith.maximumf %370, %371 : vector<8x128xf32>
    %373 = vector.broadcast %48 : f32 to vector<8x128xf32>
    %374 = arith.mulf %255, %373 : vector<8x128xf32>
    %375 = vector.broadcast %56 : f32 to vector<8x128xf32>
    %376 = arith.mulf %270, %375 : vector<8x128xf32>
    %377 = arith.addf %374, %376 : vector<8x128xf32>
    %378 = vector.broadcast %64 : f32 to vector<8x128xf32>
    %379 = arith.mulf %285, %378 : vector<8x128xf32>
    %380 = arith.addf %377, %379 : vector<8x128xf32>
    %381 = vector.broadcast %72 : f32 to vector<8x128xf32>
    %382 = arith.mulf %300, %381 : vector<8x128xf32>
    %383 = arith.addf %380, %382 : vector<8x128xf32>
    %384 = vector.broadcast %80 : f32 to vector<8x128xf32>
    %385 = arith.mulf %315, %384 : vector<8x128xf32>
    %386 = arith.addf %383, %385 : vector<8x128xf32>
    %387 = vector.broadcast %88 : f32 to vector<8x128xf32>
    %388 = arith.mulf %330, %387 : vector<8x128xf32>
    %389 = arith.addf %386, %388 : vector<8x128xf32>
    %390 = vector.broadcast %96 : f32 to vector<8x128xf32>
    %391 = arith.addf %389, %390 : vector<8x128xf32>
    %cst_15 = arith.constant 0.000000e+00 : f32
    %392 = vector.broadcast %cst_15 : f32 to vector<8x128xf32>
    %393 = arith.maximumf %391, %392 : vector<8x128xf32>
    %394 = vector.broadcast %49 : f32 to vector<8x128xf32>
    %395 = arith.mulf %255, %394 : vector<8x128xf32>
    %396 = vector.broadcast %57 : f32 to vector<8x128xf32>
    %397 = arith.mulf %270, %396 : vector<8x128xf32>
    %398 = arith.addf %395, %397 : vector<8x128xf32>
    %399 = vector.broadcast %65 : f32 to vector<8x128xf32>
    %400 = arith.mulf %285, %399 : vector<8x128xf32>
    %401 = arith.addf %398, %400 : vector<8x128xf32>
    %402 = vector.broadcast %73 : f32 to vector<8x128xf32>
    %403 = arith.mulf %300, %402 : vector<8x128xf32>
    %404 = arith.addf %401, %403 : vector<8x128xf32>
    %405 = vector.broadcast %81 : f32 to vector<8x128xf32>
    %406 = arith.mulf %315, %405 : vector<8x128xf32>
    %407 = arith.addf %404, %406 : vector<8x128xf32>
    %408 = vector.broadcast %89 : f32 to vector<8x128xf32>
    %409 = arith.mulf %330, %408 : vector<8x128xf32>
    %410 = arith.addf %407, %409 : vector<8x128xf32>
    %411 = vector.broadcast %97 : f32 to vector<8x128xf32>
    %412 = arith.addf %410, %411 : vector<8x128xf32>
    %cst_16 = arith.constant 0.000000e+00 : f32
    %413 = vector.broadcast %cst_16 : f32 to vector<8x128xf32>
    %414 = arith.maximumf %412, %413 : vector<8x128xf32>
    %415 = vector.broadcast %50 : f32 to vector<8x128xf32>
    %416 = arith.mulf %255, %415 : vector<8x128xf32>
    %417 = vector.broadcast %58 : f32 to vector<8x128xf32>
    %418 = arith.mulf %270, %417 : vector<8x128xf32>
    %419 = arith.addf %416, %418 : vector<8x128xf32>
    %420 = vector.broadcast %66 : f32 to vector<8x128xf32>
    %421 = arith.mulf %285, %420 : vector<8x128xf32>
    %422 = arith.addf %419, %421 : vector<8x128xf32>
    %423 = vector.broadcast %74 : f32 to vector<8x128xf32>
    %424 = arith.mulf %300, %423 : vector<8x128xf32>
    %425 = arith.addf %422, %424 : vector<8x128xf32>
    %426 = vector.broadcast %82 : f32 to vector<8x128xf32>
    %427 = arith.mulf %315, %426 : vector<8x128xf32>
    %428 = arith.addf %425, %427 : vector<8x128xf32>
    %429 = vector.broadcast %90 : f32 to vector<8x128xf32>
    %430 = arith.mulf %330, %429 : vector<8x128xf32>
    %431 = arith.addf %428, %430 : vector<8x128xf32>
    %432 = vector.broadcast %98 : f32 to vector<8x128xf32>
    %433 = arith.addf %431, %432 : vector<8x128xf32>
    %cst_17 = arith.constant 0.000000e+00 : f32
    %434 = vector.broadcast %cst_17 : f32 to vector<8x128xf32>
    %435 = arith.maximumf %433, %434 : vector<8x128xf32>
    %436 = vector.broadcast %51 : f32 to vector<8x128xf32>
    %437 = arith.mulf %255, %436 : vector<8x128xf32>
    %438 = vector.broadcast %59 : f32 to vector<8x128xf32>
    %439 = arith.mulf %270, %438 : vector<8x128xf32>
    %440 = arith.addf %437, %439 : vector<8x128xf32>
    %441 = vector.broadcast %67 : f32 to vector<8x128xf32>
    %442 = arith.mulf %285, %441 : vector<8x128xf32>
    %443 = arith.addf %440, %442 : vector<8x128xf32>
    %444 = vector.broadcast %75 : f32 to vector<8x128xf32>
    %445 = arith.mulf %300, %444 : vector<8x128xf32>
    %446 = arith.addf %443, %445 : vector<8x128xf32>
    %447 = vector.broadcast %83 : f32 to vector<8x128xf32>
    %448 = arith.mulf %315, %447 : vector<8x128xf32>
    %449 = arith.addf %446, %448 : vector<8x128xf32>
    %450 = vector.broadcast %91 : f32 to vector<8x128xf32>
    %451 = arith.mulf %330, %450 : vector<8x128xf32>
    %452 = arith.addf %449, %451 : vector<8x128xf32>
    %453 = vector.broadcast %99 : f32 to vector<8x128xf32>
    %454 = arith.addf %452, %453 : vector<8x128xf32>
    %cst_18 = arith.constant 0.000000e+00 : f32
    %455 = vector.broadcast %cst_18 : f32 to vector<8x128xf32>
    %456 = arith.maximumf %454, %455 : vector<8x128xf32>
    %457 = vector.broadcast %52 : f32 to vector<8x128xf32>
    %458 = arith.mulf %255, %457 : vector<8x128xf32>
    %459 = vector.broadcast %60 : f32 to vector<8x128xf32>
    %460 = arith.mulf %270, %459 : vector<8x128xf32>
    %461 = arith.addf %458, %460 : vector<8x128xf32>
    %462 = vector.broadcast %68 : f32 to vector<8x128xf32>
    %463 = arith.mulf %285, %462 : vector<8x128xf32>
    %464 = arith.addf %461, %463 : vector<8x128xf32>
    %465 = vector.broadcast %76 : f32 to vector<8x128xf32>
    %466 = arith.mulf %300, %465 : vector<8x128xf32>
    %467 = arith.addf %464, %466 : vector<8x128xf32>
    %468 = vector.broadcast %84 : f32 to vector<8x128xf32>
    %469 = arith.mulf %315, %468 : vector<8x128xf32>
    %470 = arith.addf %467, %469 : vector<8x128xf32>
    %471 = vector.broadcast %92 : f32 to vector<8x128xf32>
    %472 = arith.mulf %330, %471 : vector<8x128xf32>
    %473 = arith.addf %470, %472 : vector<8x128xf32>
    %474 = vector.broadcast %100 : f32 to vector<8x128xf32>
    %475 = arith.addf %473, %474 : vector<8x128xf32>
    %cst_19 = arith.constant 0.000000e+00 : f32
    %476 = vector.broadcast %cst_19 : f32 to vector<8x128xf32>
    %477 = arith.maximumf %475, %476 : vector<8x128xf32>
    %478 = vector.broadcast %53 : f32 to vector<8x128xf32>
    %479 = arith.mulf %255, %478 : vector<8x128xf32>
    %480 = vector.broadcast %61 : f32 to vector<8x128xf32>
    %481 = arith.mulf %270, %480 : vector<8x128xf32>
    %482 = arith.addf %479, %481 : vector<8x128xf32>
    %483 = vector.broadcast %69 : f32 to vector<8x128xf32>
    %484 = arith.mulf %285, %483 : vector<8x128xf32>
    %485 = arith.addf %482, %484 : vector<8x128xf32>
    %486 = vector.broadcast %77 : f32 to vector<8x128xf32>
    %487 = arith.mulf %300, %486 : vector<8x128xf32>
    %488 = arith.addf %485, %487 : vector<8x128xf32>
    %489 = vector.broadcast %85 : f32 to vector<8x128xf32>
    %490 = arith.mulf %315, %489 : vector<8x128xf32>
    %491 = arith.addf %488, %490 : vector<8x128xf32>
    %492 = vector.broadcast %93 : f32 to vector<8x128xf32>
    %493 = arith.mulf %330, %492 : vector<8x128xf32>
    %494 = arith.addf %491, %493 : vector<8x128xf32>
    %495 = vector.broadcast %101 : f32 to vector<8x128xf32>
    %496 = arith.addf %494, %495 : vector<8x128xf32>
    %cst_20 = arith.constant 0.000000e+00 : f32
    %497 = vector.broadcast %cst_20 : f32 to vector<8x128xf32>
    %498 = arith.maximumf %496, %497 : vector<8x128xf32>
    %499 = vector.broadcast %102 : f32 to vector<8x128xf32>
    %500 = arith.mulf %351, %499 : vector<8x128xf32>
    %501 = vector.broadcast %112 : f32 to vector<8x128xf32>
    %502 = arith.mulf %372, %501 : vector<8x128xf32>
    %503 = arith.addf %500, %502 : vector<8x128xf32>
    %504 = vector.broadcast %122 : f32 to vector<8x128xf32>
    %505 = arith.mulf %393, %504 : vector<8x128xf32>
    %506 = arith.addf %503, %505 : vector<8x128xf32>
    %507 = vector.broadcast %132 : f32 to vector<8x128xf32>
    %508 = arith.mulf %414, %507 : vector<8x128xf32>
    %509 = arith.addf %506, %508 : vector<8x128xf32>
    %510 = vector.broadcast %142 : f32 to vector<8x128xf32>
    %511 = arith.mulf %435, %510 : vector<8x128xf32>
    %512 = arith.addf %509, %511 : vector<8x128xf32>
    %513 = vector.broadcast %152 : f32 to vector<8x128xf32>
    %514 = arith.mulf %456, %513 : vector<8x128xf32>
    %515 = arith.addf %512, %514 : vector<8x128xf32>
    %516 = vector.broadcast %162 : f32 to vector<8x128xf32>
    %517 = arith.mulf %477, %516 : vector<8x128xf32>
    %518 = arith.addf %515, %517 : vector<8x128xf32>
    %519 = vector.broadcast %172 : f32 to vector<8x128xf32>
    %520 = arith.mulf %498, %519 : vector<8x128xf32>
    %521 = arith.addf %518, %520 : vector<8x128xf32>
    %522 = vector.broadcast %182 : f32 to vector<8x128xf32>
    %523 = arith.addf %521, %522 : vector<8x128xf32>
    %524 = vector.broadcast %103 : f32 to vector<8x128xf32>
    %525 = arith.mulf %351, %524 : vector<8x128xf32>
    %526 = vector.broadcast %113 : f32 to vector<8x128xf32>
    %527 = arith.mulf %372, %526 : vector<8x128xf32>
    %528 = arith.addf %525, %527 : vector<8x128xf32>
    %529 = vector.broadcast %123 : f32 to vector<8x128xf32>
    %530 = arith.mulf %393, %529 : vector<8x128xf32>
    %531 = arith.addf %528, %530 : vector<8x128xf32>
    %532 = vector.broadcast %133 : f32 to vector<8x128xf32>
    %533 = arith.mulf %414, %532 : vector<8x128xf32>
    %534 = arith.addf %531, %533 : vector<8x128xf32>
    %535 = vector.broadcast %143 : f32 to vector<8x128xf32>
    %536 = arith.mulf %435, %535 : vector<8x128xf32>
    %537 = arith.addf %534, %536 : vector<8x128xf32>
    %538 = vector.broadcast %153 : f32 to vector<8x128xf32>
    %539 = arith.mulf %456, %538 : vector<8x128xf32>
    %540 = arith.addf %537, %539 : vector<8x128xf32>
    %541 = vector.broadcast %163 : f32 to vector<8x128xf32>
    %542 = arith.mulf %477, %541 : vector<8x128xf32>
    %543 = arith.addf %540, %542 : vector<8x128xf32>
    %544 = vector.broadcast %173 : f32 to vector<8x128xf32>
    %545 = arith.mulf %498, %544 : vector<8x128xf32>
    %546 = arith.addf %543, %545 : vector<8x128xf32>
    %547 = vector.broadcast %183 : f32 to vector<8x128xf32>
    %548 = arith.addf %546, %547 : vector<8x128xf32>
    %549 = vector.broadcast %104 : f32 to vector<8x128xf32>
    %550 = arith.mulf %351, %549 : vector<8x128xf32>
    %551 = vector.broadcast %114 : f32 to vector<8x128xf32>
    %552 = arith.mulf %372, %551 : vector<8x128xf32>
    %553 = arith.addf %550, %552 : vector<8x128xf32>
    %554 = vector.broadcast %124 : f32 to vector<8x128xf32>
    %555 = arith.mulf %393, %554 : vector<8x128xf32>
    %556 = arith.addf %553, %555 : vector<8x128xf32>
    %557 = vector.broadcast %134 : f32 to vector<8x128xf32>
    %558 = arith.mulf %414, %557 : vector<8x128xf32>
    %559 = arith.addf %556, %558 : vector<8x128xf32>
    %560 = vector.broadcast %144 : f32 to vector<8x128xf32>
    %561 = arith.mulf %435, %560 : vector<8x128xf32>
    %562 = arith.addf %559, %561 : vector<8x128xf32>
    %563 = vector.broadcast %154 : f32 to vector<8x128xf32>
    %564 = arith.mulf %456, %563 : vector<8x128xf32>
    %565 = arith.addf %562, %564 : vector<8x128xf32>
    %566 = vector.broadcast %164 : f32 to vector<8x128xf32>
    %567 = arith.mulf %477, %566 : vector<8x128xf32>
    %568 = arith.addf %565, %567 : vector<8x128xf32>
    %569 = vector.broadcast %174 : f32 to vector<8x128xf32>
    %570 = arith.mulf %498, %569 : vector<8x128xf32>
    %571 = arith.addf %568, %570 : vector<8x128xf32>
    %572 = vector.broadcast %184 : f32 to vector<8x128xf32>
    %573 = arith.addf %571, %572 : vector<8x128xf32>
    %574 = vector.broadcast %105 : f32 to vector<8x128xf32>
    %575 = arith.mulf %351, %574 : vector<8x128xf32>
    %576 = vector.broadcast %115 : f32 to vector<8x128xf32>
    %577 = arith.mulf %372, %576 : vector<8x128xf32>
    %578 = arith.addf %575, %577 : vector<8x128xf32>
    %579 = vector.broadcast %125 : f32 to vector<8x128xf32>
    %580 = arith.mulf %393, %579 : vector<8x128xf32>
    %581 = arith.addf %578, %580 : vector<8x128xf32>
    %582 = vector.broadcast %135 : f32 to vector<8x128xf32>
    %583 = arith.mulf %414, %582 : vector<8x128xf32>
    %584 = arith.addf %581, %583 : vector<8x128xf32>
    %585 = vector.broadcast %145 : f32 to vector<8x128xf32>
    %586 = arith.mulf %435, %585 : vector<8x128xf32>
    %587 = arith.addf %584, %586 : vector<8x128xf32>
    %588 = vector.broadcast %155 : f32 to vector<8x128xf32>
    %589 = arith.mulf %456, %588 : vector<8x128xf32>
    %590 = arith.addf %587, %589 : vector<8x128xf32>
    %591 = vector.broadcast %165 : f32 to vector<8x128xf32>
    %592 = arith.mulf %477, %591 : vector<8x128xf32>
    %593 = arith.addf %590, %592 : vector<8x128xf32>
    %594 = vector.broadcast %175 : f32 to vector<8x128xf32>
    %595 = arith.mulf %498, %594 : vector<8x128xf32>
    %596 = arith.addf %593, %595 : vector<8x128xf32>
    %597 = vector.broadcast %185 : f32 to vector<8x128xf32>
    %598 = arith.addf %596, %597 : vector<8x128xf32>
    %599 = vector.broadcast %106 : f32 to vector<8x128xf32>
    %600 = arith.mulf %351, %599 : vector<8x128xf32>
    %601 = vector.broadcast %116 : f32 to vector<8x128xf32>
    %602 = arith.mulf %372, %601 : vector<8x128xf32>
    %603 = arith.addf %600, %602 : vector<8x128xf32>
    %604 = vector.broadcast %126 : f32 to vector<8x128xf32>
    %605 = arith.mulf %393, %604 : vector<8x128xf32>
    %606 = arith.addf %603, %605 : vector<8x128xf32>
    %607 = vector.broadcast %136 : f32 to vector<8x128xf32>
    %608 = arith.mulf %414, %607 : vector<8x128xf32>
    %609 = arith.addf %606, %608 : vector<8x128xf32>
    %610 = vector.broadcast %146 : f32 to vector<8x128xf32>
    %611 = arith.mulf %435, %610 : vector<8x128xf32>
    %612 = arith.addf %609, %611 : vector<8x128xf32>
    %613 = vector.broadcast %156 : f32 to vector<8x128xf32>
    %614 = arith.mulf %456, %613 : vector<8x128xf32>
    %615 = arith.addf %612, %614 : vector<8x128xf32>
    %616 = vector.broadcast %166 : f32 to vector<8x128xf32>
    %617 = arith.mulf %477, %616 : vector<8x128xf32>
    %618 = arith.addf %615, %617 : vector<8x128xf32>
    %619 = vector.broadcast %176 : f32 to vector<8x128xf32>
    %620 = arith.mulf %498, %619 : vector<8x128xf32>
    %621 = arith.addf %618, %620 : vector<8x128xf32>
    %622 = vector.broadcast %186 : f32 to vector<8x128xf32>
    %623 = arith.addf %621, %622 : vector<8x128xf32>
    %624 = vector.broadcast %107 : f32 to vector<8x128xf32>
    %625 = arith.mulf %351, %624 : vector<8x128xf32>
    %626 = vector.broadcast %117 : f32 to vector<8x128xf32>
    %627 = arith.mulf %372, %626 : vector<8x128xf32>
    %628 = arith.addf %625, %627 : vector<8x128xf32>
    %629 = vector.broadcast %127 : f32 to vector<8x128xf32>
    %630 = arith.mulf %393, %629 : vector<8x128xf32>
    %631 = arith.addf %628, %630 : vector<8x128xf32>
    %632 = vector.broadcast %137 : f32 to vector<8x128xf32>
    %633 = arith.mulf %414, %632 : vector<8x128xf32>
    %634 = arith.addf %631, %633 : vector<8x128xf32>
    %635 = vector.broadcast %147 : f32 to vector<8x128xf32>
    %636 = arith.mulf %435, %635 : vector<8x128xf32>
    %637 = arith.addf %634, %636 : vector<8x128xf32>
    %638 = vector.broadcast %157 : f32 to vector<8x128xf32>
    %639 = arith.mulf %456, %638 : vector<8x128xf32>
    %640 = arith.addf %637, %639 : vector<8x128xf32>
    %641 = vector.broadcast %167 : f32 to vector<8x128xf32>
    %642 = arith.mulf %477, %641 : vector<8x128xf32>
    %643 = arith.addf %640, %642 : vector<8x128xf32>
    %644 = vector.broadcast %177 : f32 to vector<8x128xf32>
    %645 = arith.mulf %498, %644 : vector<8x128xf32>
    %646 = arith.addf %643, %645 : vector<8x128xf32>
    %647 = vector.broadcast %187 : f32 to vector<8x128xf32>
    %648 = arith.addf %646, %647 : vector<8x128xf32>
    %649 = vector.broadcast %108 : f32 to vector<8x128xf32>
    %650 = arith.mulf %351, %649 : vector<8x128xf32>
    %651 = vector.broadcast %118 : f32 to vector<8x128xf32>
    %652 = arith.mulf %372, %651 : vector<8x128xf32>
    %653 = arith.addf %650, %652 : vector<8x128xf32>
    %654 = vector.broadcast %128 : f32 to vector<8x128xf32>
    %655 = arith.mulf %393, %654 : vector<8x128xf32>
    %656 = arith.addf %653, %655 : vector<8x128xf32>
    %657 = vector.broadcast %138 : f32 to vector<8x128xf32>
    %658 = arith.mulf %414, %657 : vector<8x128xf32>
    %659 = arith.addf %656, %658 : vector<8x128xf32>
    %660 = vector.broadcast %148 : f32 to vector<8x128xf32>
    %661 = arith.mulf %435, %660 : vector<8x128xf32>
    %662 = arith.addf %659, %661 : vector<8x128xf32>
    %663 = vector.broadcast %158 : f32 to vector<8x128xf32>
    %664 = arith.mulf %456, %663 : vector<8x128xf32>
    %665 = arith.addf %662, %664 : vector<8x128xf32>
    %666 = vector.broadcast %168 : f32 to vector<8x128xf32>
    %667 = arith.mulf %477, %666 : vector<8x128xf32>
    %668 = arith.addf %665, %667 : vector<8x128xf32>
    %669 = vector.broadcast %178 : f32 to vector<8x128xf32>
    %670 = arith.mulf %498, %669 : vector<8x128xf32>
    %671 = arith.addf %668, %670 : vector<8x128xf32>
    %672 = vector.broadcast %188 : f32 to vector<8x128xf32>
    %673 = arith.addf %671, %672 : vector<8x128xf32>
    %674 = vector.broadcast %109 : f32 to vector<8x128xf32>
    %675 = arith.mulf %351, %674 : vector<8x128xf32>
    %676 = vector.broadcast %119 : f32 to vector<8x128xf32>
    %677 = arith.mulf %372, %676 : vector<8x128xf32>
    %678 = arith.addf %675, %677 : vector<8x128xf32>
    %679 = vector.broadcast %129 : f32 to vector<8x128xf32>
    %680 = arith.mulf %393, %679 : vector<8x128xf32>
    %681 = arith.addf %678, %680 : vector<8x128xf32>
    %682 = vector.broadcast %139 : f32 to vector<8x128xf32>
    %683 = arith.mulf %414, %682 : vector<8x128xf32>
    %684 = arith.addf %681, %683 : vector<8x128xf32>
    %685 = vector.broadcast %149 : f32 to vector<8x128xf32>
    %686 = arith.mulf %435, %685 : vector<8x128xf32>
    %687 = arith.addf %684, %686 : vector<8x128xf32>
    %688 = vector.broadcast %159 : f32 to vector<8x128xf32>
    %689 = arith.mulf %456, %688 : vector<8x128xf32>
    %690 = arith.addf %687, %689 : vector<8x128xf32>
    %691 = vector.broadcast %169 : f32 to vector<8x128xf32>
    %692 = arith.mulf %477, %691 : vector<8x128xf32>
    %693 = arith.addf %690, %692 : vector<8x128xf32>
    %694 = vector.broadcast %179 : f32 to vector<8x128xf32>
    %695 = arith.mulf %498, %694 : vector<8x128xf32>
    %696 = arith.addf %693, %695 : vector<8x128xf32>
    %697 = vector.broadcast %189 : f32 to vector<8x128xf32>
    %698 = arith.addf %696, %697 : vector<8x128xf32>
    %699 = vector.broadcast %110 : f32 to vector<8x128xf32>
    %700 = arith.mulf %351, %699 : vector<8x128xf32>
    %701 = vector.broadcast %120 : f32 to vector<8x128xf32>
    %702 = arith.mulf %372, %701 : vector<8x128xf32>
    %703 = arith.addf %700, %702 : vector<8x128xf32>
    %704 = vector.broadcast %130 : f32 to vector<8x128xf32>
    %705 = arith.mulf %393, %704 : vector<8x128xf32>
    %706 = arith.addf %703, %705 : vector<8x128xf32>
    %707 = vector.broadcast %140 : f32 to vector<8x128xf32>
    %708 = arith.mulf %414, %707 : vector<8x128xf32>
    %709 = arith.addf %706, %708 : vector<8x128xf32>
    %710 = vector.broadcast %150 : f32 to vector<8x128xf32>
    %711 = arith.mulf %435, %710 : vector<8x128xf32>
    %712 = arith.addf %709, %711 : vector<8x128xf32>
    %713 = vector.broadcast %160 : f32 to vector<8x128xf32>
    %714 = arith.mulf %456, %713 : vector<8x128xf32>
    %715 = arith.addf %712, %714 : vector<8x128xf32>
    %716 = vector.broadcast %170 : f32 to vector<8x128xf32>
    %717 = arith.mulf %477, %716 : vector<8x128xf32>
    %718 = arith.addf %715, %717 : vector<8x128xf32>
    %719 = vector.broadcast %180 : f32 to vector<8x128xf32>
    %720 = arith.mulf %498, %719 : vector<8x128xf32>
    %721 = arith.addf %718, %720 : vector<8x128xf32>
    %722 = vector.broadcast %190 : f32 to vector<8x128xf32>
    %723 = arith.addf %721, %722 : vector<8x128xf32>
    %724 = vector.broadcast %111 : f32 to vector<8x128xf32>
    %725 = arith.mulf %351, %724 : vector<8x128xf32>
    %726 = vector.broadcast %121 : f32 to vector<8x128xf32>
    %727 = arith.mulf %372, %726 : vector<8x128xf32>
    %728 = arith.addf %725, %727 : vector<8x128xf32>
    %729 = vector.broadcast %131 : f32 to vector<8x128xf32>
    %730 = arith.mulf %393, %729 : vector<8x128xf32>
    %731 = arith.addf %728, %730 : vector<8x128xf32>
    %732 = vector.broadcast %141 : f32 to vector<8x128xf32>
    %733 = arith.mulf %414, %732 : vector<8x128xf32>
    %734 = arith.addf %731, %733 : vector<8x128xf32>
    %735 = vector.broadcast %151 : f32 to vector<8x128xf32>
    %736 = arith.mulf %435, %735 : vector<8x128xf32>
    %737 = arith.addf %734, %736 : vector<8x128xf32>
    %738 = vector.broadcast %161 : f32 to vector<8x128xf32>
    %739 = arith.mulf %456, %738 : vector<8x128xf32>
    %740 = arith.addf %737, %739 : vector<8x128xf32>
    %741 = vector.broadcast %171 : f32 to vector<8x128xf32>
    %742 = arith.mulf %477, %741 : vector<8x128xf32>
    %743 = arith.addf %740, %742 : vector<8x128xf32>
    %744 = vector.broadcast %181 : f32 to vector<8x128xf32>
    %745 = arith.mulf %498, %744 : vector<8x128xf32>
    %746 = arith.addf %743, %745 : vector<8x128xf32>
    %747 = vector.broadcast %191 : f32 to vector<8x128xf32>
    %748 = arith.addf %746, %747 : vector<8x128xf32>
    %c0_21 = arith.constant 0 : index
    %c0_22 = arith.constant 0 : index
    %c0_23 = arith.constant 0 : index
    %749 = vector.load %arg3[%c0_21, %c0_22, %c0_23] : memref<10x8x128xf32, #tpu.memory_space<vmem>>, vector<1x8x128xf32>
    %750 = vector.shape_cast %749 : vector<1x8x128xf32> to vector<8x128xf32>
    %751 = vector.shape_cast %523 : vector<8x128xf32> to vector<1x8x128xf32>
    tpu.vector_store %arg3[%c0_21, %c0_22, %c0_23], %751 {strides = array<i32>} : memref<10x8x128xf32, #tpu.memory_space<vmem>>, vector<1x8x128xf32>,
    %c1_24 = arith.constant 1 : index
    %c0_25 = arith.constant 0 : index
    %c0_26 = arith.constant 0 : index
    %752 = vector.load %arg3[%c1_24, %c0_25, %c0_26] : memref<10x8x128xf32, #tpu.memory_space<vmem>>, vector<1x8x128xf32>
    %753 = vector.shape_cast %752 : vector<1x8x128xf32> to vector<8x128xf32>
    %754 = vector.shape_cast %548 : vector<8x128xf32> to vector<1x8x128xf32>
    tpu.vector_store %arg3[%c1_24, %c0_25, %c0_26], %754 {strides = array<i32>} : memref<10x8x128xf32, #tpu.memory_space<vmem>>, vector<1x8x128xf32>,
    %c2_27 = arith.constant 2 : index
    %c0_28 = arith.constant 0 : index
    %c0_29 = arith.constant 0 : index
    %755 = vector.load %arg3[%c2_27, %c0_28, %c0_29] : memref<10x8x128xf32, #tpu.memory_space<vmem>>, vector<1x8x128xf32>
    %756 = vector.shape_cast %755 : vector<1x8x128xf32> to vector<8x128xf32>
    %757 = vector.shape_cast %573 : vector<8x128xf32> to vector<1x8x128xf32>
    tpu.vector_store %arg3[%c2_27, %c0_28, %c0_29], %757 {strides = array<i32>} : memref<10x8x128xf32, #tpu.memory_space<vmem>>, vector<1x8x128xf32>,
    %c3_30 = arith.constant 3 : index
    %c0_31 = arith.constant 0 : index
    %c0_32 = arith.constant 0 : index
    %758 = vector.load %arg3[%c3_30, %c0_31, %c0_32] : memref<10x8x128xf32, #tpu.memory_space<vmem>>, vector<1x8x128xf32>
    %759 = vector.shape_cast %758 : vector<1x8x128xf32> to vector<8x128xf32>
    %760 = vector.shape_cast %598 : vector<8x128xf32> to vector<1x8x128xf32>
    tpu.vector_store %arg3[%c3_30, %c0_31, %c0_32], %760 {strides = array<i32>} : memref<10x8x128xf32, #tpu.memory_space<vmem>>, vector<1x8x128xf32>,
    %c4_33 = arith.constant 4 : index
    %c0_34 = arith.constant 0 : index
    %c0_35 = arith.constant 0 : index
    %761 = vector.load %arg3[%c4_33, %c0_34, %c0_35] : memref<10x8x128xf32, #tpu.memory_space<vmem>>, vector<1x8x128xf32>
    %762 = vector.shape_cast %761 : vector<1x8x128xf32> to vector<8x128xf32>
    %763 = vector.shape_cast %623 : vector<8x128xf32> to vector<1x8x128xf32>
    tpu.vector_store %arg3[%c4_33, %c0_34, %c0_35], %763 {strides = array<i32>} : memref<10x8x128xf32, #tpu.memory_space<vmem>>, vector<1x8x128xf32>,
    %c5_36 = arith.constant 5 : index
    %c0_37 = arith.constant 0 : index
    %c0_38 = arith.constant 0 : index
    %764 = vector.load %arg3[%c5_36, %c0_37, %c0_38] : memref<10x8x128xf32, #tpu.memory_space<vmem>>, vector<1x8x128xf32>
    %765 = vector.shape_cast %764 : vector<1x8x128xf32> to vector<8x128xf32>
    %766 = vector.shape_cast %648 : vector<8x128xf32> to vector<1x8x128xf32>
    tpu.vector_store %arg3[%c5_36, %c0_37, %c0_38], %766 {strides = array<i32>} : memref<10x8x128xf32, #tpu.memory_space<vmem>>, vector<1x8x128xf32>,
    %c6_39 = arith.constant 6 : index
    %c0_40 = arith.constant 0 : index
    %c0_41 = arith.constant 0 : index
    %767 = vector.load %arg3[%c6_39, %c0_40, %c0_41] : memref<10x8x128xf32, #tpu.memory_space<vmem>>, vector<1x8x128xf32>
    %768 = vector.shape_cast %767 : vector<1x8x128xf32> to vector<8x128xf32>
    %769 = vector.shape_cast %673 : vector<8x128xf32> to vector<1x8x128xf32>
    tpu.vector_store %arg3[%c6_39, %c0_40, %c0_41], %769 {strides = array<i32>} : memref<10x8x128xf32, #tpu.memory_space<vmem>>, vector<1x8x128xf32>,
    %c7_42 = arith.constant 7 : index
    %c0_43 = arith.constant 0 : index
    %c0_44 = arith.constant 0 : index
    %770 = vector.load %arg3[%c7_42, %c0_43, %c0_44] : memref<10x8x128xf32, #tpu.memory_space<vmem>>, vector<1x8x128xf32>
    %771 = vector.shape_cast %770 : vector<1x8x128xf32> to vector<8x128xf32>
    %772 = vector.shape_cast %698 : vector<8x128xf32> to vector<1x8x128xf32>
    tpu.vector_store %arg3[%c7_42, %c0_43, %c0_44], %772 {strides = array<i32>} : memref<10x8x128xf32, #tpu.memory_space<vmem>>, vector<1x8x128xf32>,
    %c8_45 = arith.constant 8 : index
    %c0_46 = arith.constant 0 : index
    %c0_47 = arith.constant 0 : index
    %773 = vector.load %arg3[%c8_45, %c0_46, %c0_47] : memref<10x8x128xf32, #tpu.memory_space<vmem>>, vector<1x8x128xf32>
    %774 = vector.shape_cast %773 : vector<1x8x128xf32> to vector<8x128xf32>
    %775 = vector.shape_cast %723 : vector<8x128xf32> to vector<1x8x128xf32>
    tpu.vector_store %arg3[%c8_45, %c0_46, %c0_47], %775 {strides = array<i32>} : memref<10x8x128xf32, #tpu.memory_space<vmem>>, vector<1x8x128xf32>,
    %c9_48 = arith.constant 9 : index
    %c0_49 = arith.constant 0 : index
    %c0_50 = arith.constant 0 : index
    %776 = vector.load %arg3[%c9_48, %c0_49, %c0_50] : memref<10x8x128xf32, #tpu.memory_space<vmem>>, vector<1x8x128xf32>
    %777 = vector.shape_cast %776 : vector<1x8x128xf32> to vector<8x128xf32>
    %778 = vector.shape_cast %748 : vector<8x128xf32> to vector<1x8x128xf32>
    tpu.vector_store %arg3[%c9_48, %c0_49, %c0_50], %778 {strides = array<i32>} : memref<10x8x128xf32, #tpu.memory_space<vmem>>, vector<1x8x128xf32>,
    return
  }
  func.func @transform_0(%arg0: i32) -> (i32, i32) {
    %c0_i32 = arith.constant 0 : i32
    %c0_i32_0 = arith.constant 0 : i32
    return %arg0, %c0_i32 : i32, i32
  }
  func.func @transform_1(%arg0: i32) -> i32 {
    %c0_i32 = arith.constant 0 : i32
    %c0_i32_0 = arith.constant 0 : i32
    return %c0_i32 : i32
  }
  func.func @transform_2(%arg0: i32) -> (i32, i32, i32) {
    %c0_i32 = arith.constant 0 : i32
    %c0_i32_0 = arith.constant 0 : i32
    %c0_i32_1 = arith.constant 0 : i32
    return %c0_i32, %arg0, %c0_i32_0 : i32, i32, i32
  }
}

</mosaic_0001>

<llo_original>
// kernel: decoder_net_block.1
$region0: #{decoder_net_block.1}
  #allocation0 [shape = 'u32[]', space=smem, size = 0x4, offset = 0x4, fixed_abs, tag = 'smem constant byte address 0x4 - core index']
  #allocation1 [shape = 'u32[144,128]{1,0:T(1,128)}', space=vmem, size = 0x12000, scoped, tag = 'internal scratch']
  %s0 = inlined_call_operand.vmem [shape: f32[8,128], index: 0, kind: input, shape index: {}]
  %s1 = inlined_call_operand.vmem [shape: f32[202], index: 1, kind: input, shape index: {}]
  %s2 = inlined_call_operand.vmem [shape: f32[10,8,128], index: 2, kind: output, shape index: {}]
  %s3 = sld [smem:[#allocation0]]
  $region22: #{decoder_net_block.1} parent=0
    _
  %s5 = ssub.s32 1, %s3
  %s6 = scalar_select 0, %s5, %s3
  $region1: #{decoder_net_block.1} parent=0
    #allocation2 [shape = 'u8[1024]{0}', space=smem, size = 0x400, scoped, tag = 'input window, operand 1, single buffered']
    #allocation3 [shape = 's32[1]{0}', space=sflag, size = 0x4, scoped, tag = 'scoped memory for decoder_net_block.1']
    %7 = vsyncpa [#allocation3], 0
    // Predicated region
    $region2: #{decoder_net_block.1} parent=1 // pred_check
      _
    $region3: #{decoder_net_block.1} parent=1 // pred_check_branch
      %9 = sbr.rel (0) target = $region5
    $region4: #{decoder_net_block.1} parent=1 // pred_region
      _
    $region5: #{decoder_net_block.1} parent=1 // pred_fallthru
      _
    // Predicated region
    $region6: #{decoder_net_block.1} parent=1 // pred_check
      _
    $region7: #{decoder_net_block.1} parent=1 // pred_check_branch
      %11 = sbr.rel (0) target = $region9
    $region8: #{decoder_net_block.1} parent=1 // pred_region
      %s13 = ssub.s32 32, 32
      %14 = vsyncadd [#allocation3], %s13
      %s16 = sshll.u32 %s1, 4
      %s17 = int_to_ptr.vmem [resolvable:$true] %s16
      %19 = dma.vmem_to_smem %s17, 32, [#allocation2], [#allocation3]
    $region9: #{decoder_net_block.1} parent=1 // pred_fallthru
      _
    // Predicated region
    $region10: #{decoder_net_block.1} parent=1 // pred_check
      _
    $region11: #{decoder_net_block.1} parent=1 // pred_check_branch
      %21 = sbr.rel (0) target = $region13
    $region12: #{decoder_net_block.1} parent=1 // pred_region
      %22 = dma.done [#allocation3], 32
    $region13: #{decoder_net_block.1} parent=1 // pred_fallthru
      _
    %23 = sfence
    %s24 = sld [smem:[#allocation2]]
    %s25 = sld [smem:[#allocation2 + $0x1]]
    %s26 = sld [smem:[#allocation2 + $0x2]]
    %s27 = sld [smem:[#allocation2 + $0x3]]
    %s28 = sld [smem:[#allocation2 + $0x4]]
    %s29 = sld [smem:[#allocation2 + $0x5]]
    %s30 = sld [smem:[#allocation2 + $0x6]]
    %s31 = sld [smem:[#allocation2 + $0x7]]
    %s32 = sld [smem:[#allocation2 + $0x8]]
    %s33 = sld [smem:[#allocation2 + $0x9]]
    %s34 = sld [smem:[#allocation2 + $0xa]]
    %s35 = sld [smem:[#allocation2 + $0xb]]
    %s36 = sld [smem:[#allocation2 + $0xc]]
    %s37 = sld [smem:[#allocation2 + $0xd]]
    %s38 = sld [smem:[#allocation2 + $0xe]]
    %s39 = sld [smem:[#allocation2 + $0xf]]
    %s40 = sld [smem:[#allocation2 + $0x10]]
    %s41 = sld [smem:[#allocation2 + $0x11]]
    %s42 = sld [smem:[#allocation2 + $0x12]]
    %s43 = sld [smem:[#allocation2 + $0x13]]
    %s44 = sld [smem:[#allocation2 + $0x14]]
    %s45 = sld [smem:[#allocation2 + $0x15]]
    %s46 = sld [smem:[#allocation2 + $0x16]]
    %s47 = sld [smem:[#allocation2 + $0x17]]
    %s48 = sld [smem:[#allocation2 + $0x18]]
    %s49 = sld [smem:[#allocation2 + $0x19]]
    %s50 = sld [smem:[#allocation2 + $0x1a]]
    %s51 = sld [smem:[#allocation2 + $0x1b]]
    %s52 = sld [smem:[#allocation2 + $0x1c]]
    %s53 = sld [smem:[#allocation2 + $0x1d]]
    %s54 = sld [smem:[#allocation2 + $0x1e]]
    %s55 = sld [smem:[#allocation2 + $0x1f]]
    %s56 = sld [smem:[#allocation2 + $0x20]]
    %s57 = sld [smem:[#allocation2 + $0x21]]
    %s58 = sld [smem:[#allocation2 + $0x22]]
    %s59 = sld [smem:[#allocation2 + $0x23]]
    %s60 = sld [smem:[#allocation2 + $0x24]]
    %s61 = sld [smem:[#allocation2 + $0x25]]
    %s62 = sld [smem:[#allocation2 + $0x26]]
    %s63 = sld [smem:[#allocation2 + $0x27]]
    %s64 = sld [smem:[#allocation2 + $0x28]]
    %s65 = sld [smem:[#allocation2 + $0x29]]
    %s66 = sld [smem:[#allocation2 + $0x2a]]
    %s67 = sld [smem:[#allocation2 + $0x2b]]
    %s68 = sld [smem:[#allocation2 + $0x2c]]
    %s69 = sld [smem:[#allocation2 + $0x2d]]
    %s70 = sld [smem:[#allocation2 + $0x2e]]
    %s71 = sld [smem:[#allocation2 + $0x2f]]
    %s72 = sld [smem:[#allocation2 + $0x30]]
    %s73 = sld [smem:[#allocation2 + $0x31]]
    %s74 = sld [smem:[#allocation2 + $0x32]]
    %s75 = sld [smem:[#allocation2 + $0x33]]
    %s76 = sld [smem:[#allocation2 + $0x34]]
    %s77 = sld [smem:[#allocation2 + $0x35]]
    %s78 = sld [smem:[#allocation2 + $0x36]]
    %s79 = sld [smem:[#allocation2 + $0x37]]
    %s80 = sld [smem:[#allocation2 + $0x38]]
    %s81 = sld [smem:[#allocation2 + $0x39]]
    %s82 = sld [smem:[#allocation2 + $0x3a]]
    %s83 = sld [smem:[#allocation2 + $0x3b]]
    %s84 = sld [smem:[#allocation2 + $0x3c]]
    %s85 = sld [smem:[#allocation2 + $0x3d]]
    %s86 = sld [smem:[#allocation2 + $0x3e]]
    %s87 = sld [smem:[#allocation2 + $0x3f]]
    %s88 = sld [smem:[#allocation2 + $0x40]]
    %s89 = sld [smem:[#allocation2 + $0x41]]
    %s90 = sld [smem:[#allocation2 + $0x42]]
    %s91 = sld [smem:[#allocation2 + $0x43]]
    %s92 = sld [smem:[#allocation2 + $0x44]]
    %s93 = sld [smem:[#allocation2 + $0x45]]
    %s94 = sld [smem:[#allocation2 + $0x46]]
    %s95 = sld [smem:[#allocation2 + $0x47]]
    %s96 = sld [smem:[#allocation2 + $0x48]]
    %s97 = sld [smem:[#allocation2 + $0x49]]
    %s98 = sld [smem:[#allocation2 + $0x4a]]
    %s99 = sld [smem:[#allocation2 + $0x4b]]
    %s100 = sld [smem:[#allocation2 + $0x4c]]
    %s101 = sld [smem:[#allocation2 + $0x4d]]
    %s102 = sld [smem:[#allocation2 + $0x4e]]
    %s103 = sld [smem:[#allocation2 + $0x4f]]
    %s104 = sld [smem:[#allocation2 + $0x50]]
    %s105 = sld [smem:[#allocation2 + $0x51]]
    %s106 = sld [smem:[#allocation2 + $0x52]]
    %s107 = sld [smem:[#allocation2 + $0x53]]
    %s108 = sld [smem:[#allocation2 + $0x54]]
    %s109 = sld [smem:[#allocation2 + $0x55]]
    %s110 = sld [smem:[#allocation2 + $0x56]]
    %s111 = sld [smem:[#allocation2 + $0x57]]
    %s112 = sld [smem:[#allocation2 + $0x58]]
    %s113 = sld [smem:[#allocation2 + $0x59]]
    %s114 = sld [smem:[#allocation2 + $0x5a]]
    %s115 = sld [smem:[#allocation2 + $0x5b]]
    %s116 = sld [smem:[#allocation2 + $0x5c]]
    %s117 = sld [smem:[#allocation2 + $0x5d]]
    %s118 = sld [smem:[#allocation2 + $0x5e]]
    %s119 = sld [smem:[#allocation2 + $0x5f]]
    %s120 = sld [smem:[#allocation2 + $0x60]]
    %s121 = sld [smem:[#allocation2 + $0x61]]
    %s122 = sld [smem:[#allocation2 + $0x62]]
    %s123 = sld [smem:[#allocation2 + $0x63]]
    %s124 = sld [smem:[#allocation2 + $0x64]]
    %s125 = sld [smem:[#allocation2 + $0x65]]
    %s126 = sld [smem:[#allocation2 + $0x66]]
    %s127 = sld [smem:[#allocation2 + $0x67]]
    %s128 = sld [smem:[#allocation2 + $0x68]]
    %s129 = sld [smem:[#allocation2 + $0x69]]
    %s130 = sld [smem:[#allocation2 + $0x6a]]
    %s131 = sld [smem:[#allocation2 + $0x6b]]
    %s132 = sld [smem:[#allocation2 + $0x6c]]
    %s133 = sld [smem:[#allocation2 + $0x6d]]
    %s134 = sld [smem:[#allocation2 + $0x6e]]
    %s135 = sld [smem:[#allocation2 + $0x6f]]
    %s136 = sld [smem:[#allocation2 + $0x70]]
    %s137 = sld [smem:[#allocation2 + $0x71]]
    %s138 = sld [smem:[#allocation2 + $0x72]]
    %s139 = sld [smem:[#allocation2 + $0x73]]
    %s140 = sld [smem:[#allocation2 + $0x74]]
    %s141 = sld [smem:[#allocation2 + $0x75]]
    %s142 = sld [smem:[#allocation2 + $0x76]]
    %s143 = sld [smem:[#allocation2 + $0x77]]
    %s144 = sld [smem:[#allocation2 + $0x78]]
    %s145 = sld [smem:[#allocation2 + $0x79]]
    %s146 = sld [smem:[#allocation2 + $0x7a]]
    %s147 = sld [smem:[#allocation2 + $0x7b]]
    %s148 = sld [smem:[#allocation2 + $0x7c]]
    %s149 = sld [smem:[#allocation2 + $0x7d]]
    %s150 = sld [smem:[#allocation2 + $0x7e]]
    %s151 = sld [smem:[#allocation2 + $0x7f]]
    %s152 = sld [smem:[#allocation2 + $0x80]]
    %s153 = sld [smem:[#allocation2 + $0x81]]
    %s154 = sld [smem:[#allocation2 + $0x82]]
    %s155 = sld [smem:[#allocation2 + $0x83]]
    %s156 = sld [smem:[#allocation2 + $0x84]]
    %s157 = sld [smem:[#allocation2 + $0x85]]
    %s158 = sld [smem:[#allocation2 + $0x86]]
    %s159 = sld [smem:[#allocation2 + $0x87]]
    %s160 = sld [smem:[#allocation2 + $0x88]]
    %s161 = sld [smem:[#allocation2 + $0x89]]
    %s162 = sld [smem:[#allocation2 + $0x8a]]
    %s163 = sld [smem:[#allocation2 + $0x8b]]
    %s164 = sld [smem:[#allocation2 + $0x8c]]
    %s165 = sld [smem:[#allocation2 + $0x8d]]
    %s166 = sld [smem:[#allocation2 + $0x8e]]
    %s167 = sld [smem:[#allocation2 + $0x8f]]
    %s168 = sld [smem:[#allocation2 + $0x90]]
    %s169 = sld [smem:[#allocation2 + $0x91]]
    %s170 = sld [smem:[#allocation2 + $0x92]]
    %s171 = sld [smem:[#allocation2 + $0x93]]
    %s172 = sld [smem:[#allocation2 + $0x94]]
    %s173 = sld [smem:[#allocation2 + $0x95]]
    %s174 = sld [smem:[#allocation2 + $0x96]]
    %s175 = sld [smem:[#allocation2 + $0x97]]
    %s176 = sld [smem:[#allocation2 + $0x98]]
    %s177 = sld [smem:[#allocation2 + $0x99]]
    %s178 = sld [smem:[#allocation2 + $0x9a]]
    %s179 = sld [smem:[#allocation2 + $0x9b]]
    %s180 = sld [smem:[#allocation2 + $0x9c]]
    %s181 = sld [smem:[#allocation2 + $0x9d]]
    %s182 = sld [smem:[#allocation2 + $0x9e]]
    %s183 = sld [smem:[#allocation2 + $0x9f]]
    %s184 = sld [smem:[#allocation2 + $0xa0]]
    %s185 = sld [smem:[#allocation2 + $0xa1]]
    %s186 = sld [smem:[#allocation2 + $0xa2]]
    %s187 = sld [smem:[#allocation2 + $0xa3]]
    %s188 = sld [smem:[#allocation2 + $0xa4]]
    %s189 = sld [smem:[#allocation2 + $0xa5]]
    %s190 = sld [smem:[#allocation2 + $0xa6]]
    %s191 = sld [smem:[#allocation2 + $0xa7]]
    %s192 = sld [smem:[#allocation2 + $0xa8]]
    %s193 = sld [smem:[#allocation2 + $0xa9]]
    %s194 = sld [smem:[#allocation2 + $0xaa]]
    %s195 = sld [smem:[#allocation2 + $0xab]]
    %s196 = sld [smem:[#allocation2 + $0xac]]
    %s197 = sld [smem:[#allocation2 + $0xad]]
    %s198 = sld [smem:[#allocation2 + $0xae]]
    %s199 = sld [smem:[#allocation2 + $0xaf]]
    %s200 = sld [smem:[#allocation2 + $0xb0]]
    %s201 = sld [smem:[#allocation2 + $0xb1]]
    %s202 = sld [smem:[#allocation2 + $0xb2]]
    %s203 = sld [smem:[#allocation2 + $0xb3]]
    %s204 = sld [smem:[#allocation2 + $0xb4]]
    %s205 = sld [smem:[#allocation2 + $0xb5]]
    %s206 = sld [smem:[#allocation2 + $0xc0]]
    %s207 = sld [smem:[#allocation2 + $0xc1]]
    %s208 = sld [smem:[#allocation2 + $0xc2]]
    %s209 = sld [smem:[#allocation2 + $0xc3]]
    %s210 = sld [smem:[#allocation2 + $0xc4]]
    %s211 = sld [smem:[#allocation2 + $0xc5]]
    %s212 = sld [smem:[#allocation2 + $0xc6]]
    %s213 = sld [smem:[#allocation2 + $0xc7]]
    %s214 = sld [smem:[#allocation2 + $0xc8]]
    %s215 = sld [smem:[#allocation2 + $0xc9]]
    %v216 = vld [vmem:[%s0] sm:$0xff]
    %v217 = vstv %s24
    %v218 = vmul.f32 %v216, %v217
    %v219 = vstv %s26
    %v220 = vadd.f32 %v218, %v219
    %v221 = vmax.f32 %v220, 0.0
    %v222 = vstv %s25
    %v223 = vmul.f32 %v216, %v222
    %v224 = vstv %s27
    %v225 = vadd.f32 %v223, %v224
    %v226 = vmax.f32 %v225, 0.0
    %v227 = vstv %s28
    %v228 = vmul.f32 %v221, %v227
    %v229 = vstv %s32
    %v230 = vmul.f32 %v226, %v229
    %v231 = vadd.f32 %v228, %v230
    %v232 = vstv %s36
    %v233 = vadd.f32 %v231, %v232
    %v234 = vmax.f32 %v233, 0.0
    %v235 = vstv %s29
    %v236 = vmul.f32 %v221, %v235
    %v237 = vstv %s33
    %v238 = vmul.f32 %v226, %v237
    %v239 = vadd.f32 %v236, %v238
    %v240 = vstv %s37
    %v241 = vadd.f32 %v239, %v240
    %v242 = vmax.f32 %v241, 0.0
    %v243 = vstv %s30
    %v244 = vmul.f32 %v221, %v243
    %v245 = vstv %s34
    %v246 = vmul.f32 %v226, %v245
    %v247 = vadd.f32 %v244, %v246
    %v248 = vstv %s38
    %v249 = vadd.f32 %v247, %v248
    %v250 = vmax.f32 %v249, 0.0
    %v251 = vstv %s31
    %v252 = vmul.f32 %v221, %v251
    %v253 = vstv %s35
    %v254 = vmul.f32 %v226, %v253
    %v255 = vadd.f32 %v252, %v254
    %v256 = vstv %s39
    %v257 = vadd.f32 %v255, %v256
    %v258 = vmax.f32 %v257, 0.0
    %v259 = vstv %s40
    %v260 = vmul.f32 %v234, %v259
    %v261 = vstv %s46
    %v262 = vmul.f32 %v242, %v261
    %v263 = vadd.f32 %v260, %v262
    %v264 = vstv %s52
    %v265 = vmul.f32 %v250, %v264
    %v266 = vadd.f32 %v263, %v265
    %v267 = vstv %s58
    %v268 = vmul.f32 %v258, %v267
    %v269 = vadd.f32 %v266, %v268
    %v270 = vstv %s64
    %v271 = vadd.f32 %v269, %v270
    %v272 = vmax.f32 %v271, 0.0
    %v273 = vstv %s41
    %v274 = vmul.f32 %v234, %v273
    %v275 = vstv %s47
    %v276 = vmul.f32 %v242, %v275
    %v277 = vadd.f32 %v274, %v276
    %v278 = vstv %s53
    %v279 = vmul.f32 %v250, %v278
    %v280 = vadd.f32 %v277, %v279
    %v281 = vstv %s59
    %v282 = vmul.f32 %v258, %v281
    %v283 = vadd.f32 %v280, %v282
    %v284 = vstv %s65
    %v285 = vadd.f32 %v283, %v284
    %v286 = vmax.f32 %v285, 0.0
    %v287 = vstv %s42
    %v288 = vmul.f32 %v234, %v287
    %v289 = vstv %s48
    %v290 = vmul.f32 %v242, %v289
    %v291 = vadd.f32 %v288, %v290
    %v292 = vstv %s54
    %v293 = vmul.f32 %v250, %v292
    %v294 = vadd.f32 %v291, %v293
    %v295 = vstv %s60
    %v296 = vmul.f32 %v258, %v295
    %v297 = vadd.f32 %v294, %v296
    %v298 = vstv %s66
    %v299 = vadd.f32 %v297, %v298
    %v300 = vmax.f32 %v299, 0.0
    %v301 = vstv %s43
    %v302 = vmul.f32 %v234, %v301
    %v303 = vstv %s49
    %v304 = vmul.f32 %v242, %v303
    %v305 = vadd.f32 %v302, %v304
    %v306 = vstv %s55
    %v307 = vmul.f32 %v250, %v306
    %v308 = vadd.f32 %v305, %v307
    %v309 = vstv %s61
    %v310 = vmul.f32 %v258, %v309
    %v311 = vadd.f32 %v308, %v310
    %v312 = vstv %s67
    %v313 = vadd.f32 %v311, %v312
    %v314 = vmax.f32 %v313, 0.0
    %v315 = vstv %s44
    %v316 = vmul.f32 %v234, %v315
    %v317 = vstv %s50
    %v318 = vmul.f32 %v242, %v317
    %v319 = vadd.f32 %v316, %v318
    %v320 = vstv %s56
    %v321 = vmul.f32 %v250, %v320
    %v322 = vadd.f32 %v319, %v321
    %v323 = vstv %s62
    %v324 = vmul.f32 %v258, %v323
    %v325 = vadd.f32 %v322, %v324
    %v326 = vstv %s68
    %v327 = vadd.f32 %v325, %v326
    %v328 = vmax.f32 %v327, 0.0
    %v329 = vstv %s45
    %v330 = vmul.f32 %v234, %v329
    %v331 = vstv %s51
    %v332 = vmul.f32 %v242, %v331
    %v333 = vadd.f32 %v330, %v332
    %v334 = vstv %s57
    %v335 = vmul.f32 %v250, %v334
    %v336 = vadd.f32 %v333, %v335
    %v337 = vstv %s63
    %v338 = vmul.f32 %v258, %v337
    %v339 = vadd.f32 %v336, %v338
    %v340 = vstv %s69
    %v341 = vadd.f32 %v339, %v340
    %v342 = vmax.f32 %v341, 0.0
    %v343 = vstv %s70
    %v344 = vmul.f32 %v272, %v343
    %v345 = vstv %s78
    %v346 = vmul.f32 %v286, %v345
    %v347 = vadd.f32 %v344, %v346
    %v348 = vstv %s86
    %v349 = vmul.f32 %v300, %v348
    %v350 = vadd.f32 %v347, %v349
    %v351 = vstv %s94
    %v352 = vmul.f32 %v314, %v351
    %v353 = vadd.f32 %v350, %v352
    %v354 = vstv %s102
    %v355 = vmul.f32 %v328, %v354
    %v356 = vadd.f32 %v353, %v355
    %v357 = vstv %s110
    %v358 = vmul.f32 %v342, %v357
    %v359 = vadd.f32 %v356, %v358
    %v360 = vstv %s118
    %v361 = vadd.f32 %v359, %v360
    %v362 = vmax.f32 %v361, 0.0
    %v363 = vstv %s71
    %v364 = vmul.f32 %v272, %v363
    %v365 = vstv %s79
    %v366 = vmul.f32 %v286, %v365
    %v367 = vadd.f32 %v364, %v366
    %v368 = vstv %s87
    %v369 = vmul.f32 %v300, %v368
    %v370 = vadd.f32 %v367, %v369
    %v371 = vstv %s95
    %v372 = vmul.f32 %v314, %v371
    %v373 = vadd.f32 %v370, %v372
    %v374 = vstv %s103
    %v375 = vmul.f32 %v328, %v374
    %v376 = vadd.f32 %v373, %v375
    %v377 = vstv %s111
    %v378 = vmul.f32 %v342, %v377
    %v379 = vadd.f32 %v376, %v378
    %v380 = vstv %s119
    %v381 = vadd.f32 %v379, %v380
    %v382 = vmax.f32 %v381, 0.0
    %v383 = vstv %s72
    %v384 = vmul.f32 %v272, %v383
    %v385 = vstv %s80
    %v386 = vmul.f32 %v286, %v385
    %v387 = vadd.f32 %v384, %v386
    %v388 = vstv %s88
    %v389 = vmul.f32 %v300, %v388
    %v390 = vadd.f32 %v387, %v389
    %v391 = vstv %s96
    %v392 = vmul.f32 %v314, %v391
    %v393 = vadd.f32 %v390, %v392
    %v394 = vstv %s104
    %v395 = vmul.f32 %v328, %v394
    %v396 = vadd.f32 %v393, %v395
    %v397 = vstv %s112
    %v398 = vmul.f32 %v342, %v397
    %v399 = vadd.f32 %v396, %v398
    %v400 = vstv %s120
    %v401 = vadd.f32 %v399, %v400
    %v402 = vmax.f32 %v401, 0.0
    %v403 = vstv %s73
    %v404 = vmul.f32 %v272, %v403
    %v405 = vstv %s81
    %v406 = vmul.f32 %v286, %v405
    %v407 = vadd.f32 %v404, %v406
    %v408 = vstv %s89
    %v409 = vmul.f32 %v300, %v408
    %v410 = vadd.f32 %v407, %v409
    %v411 = vstv %s97
    %v412 = vmul.f32 %v314, %v411
    %v413 = vadd.f32 %v410, %v412
    %v414 = vstv %s105
    %v415 = vmul.f32 %v328, %v414
    %v416 = vadd.f32 %v413, %v415
    %v417 = vstv %s113
    %v418 = vmul.f32 %v342, %v417
    %v419 = vadd.f32 %v416, %v418
    %v420 = vstv %s121
    %v421 = vadd.f32 %v419, %v420
    %v422 = vmax.f32 %v421, 0.0
    %v423 = vstv %s74
    %v424 = vmul.f32 %v272, %v423
    %v425 = vstv %s82
    %v426 = vmul.f32 %v286, %v425
    %v427 = vadd.f32 %v424, %v426
    %v428 = vstv %s90
    %v429 = vmul.f32 %v300, %v428
    %v430 = vadd.f32 %v427, %v429
    %v431 = vstv %s98
    %v432 = vmul.f32 %v314, %v431
    %v433 = vadd.f32 %v430, %v432
    %v434 = vstv %s106
    %v435 = vmul.f32 %v328, %v434
    %v436 = vadd.f32 %v433, %v435
    %v437 = vstv %s114
    %v438 = vmul.f32 %v342, %v437
    %v439 = vadd.f32 %v436, %v438
    %v440 = vstv %s122
    %v441 = vadd.f32 %v439, %v440
    %v442 = vmax.f32 %v441, 0.0
    %v443 = vstv %s75
    %v444 = vmul.f32 %v272, %v443
    %v445 = vstv %s83
    %v446 = vmul.f32 %v286, %v445
    %v447 = vadd.f32 %v444, %v446
    %v448 = vstv %s91
    %v449 = vmul.f32 %v300, %v448
    %v450 = vadd.f32 %v447, %v449
    %v451 = vstv %s99
    %v452 = vmul.f32 %v314, %v451
    %v453 = vadd.f32 %v450, %v452
    %v454 = vstv %s107
    %v455 = vmul.f32 %v328, %v454
    %v456 = vadd.f32 %v453, %v455
    %v457 = vstv %s115
    %v458 = vmul.f32 %v342, %v457
    %v459 = vadd.f32 %v456, %v458
    %v460 = vstv %s123
    %v461 = vadd.f32 %v459, %v460
    %v462 = vmax.f32 %v461, 0.0
    %v463 = vstv %s76
    %v464 = vmul.f32 %v272, %v463
    %v465 = vstv %s84
    %v466 = vmul.f32 %v286, %v465
    %v467 = vadd.f32 %v464, %v466
    %v468 = vstv %s92
    %v469 = vmul.f32 %v300, %v468
    %v470 = vadd.f32 %v467, %v469
    %v471 = vstv %s100
    %v472 = vmul.f32 %v314, %v471
    %v473 = vadd.f32 %v470, %v472
    %v474 = vstv %s108
    %v475 = vmul.f32 %v328, %v474
    %v476 = vadd.f32 %v473, %v475
    %v477 = vstv %s116
    %v478 = vmul.f32 %v342, %v477
    %v479 = vadd.f32 %v476, %v478
    %v480 = vstv %s124
    %v481 = vadd.f32 %v479, %v480
    %v482 = vmax.f32 %v481, 0.0
    %v483 = vstv %s77
    %v484 = vmul.f32 %v272, %v483
    %v485 = vstv %s85
    %v486 = vmul.f32 %v286, %v485
    %v487 = vadd.f32 %v484, %v486
    %v488 = vstv %s93
    %v489 = vmul.f32 %v300, %v488
    %v490 = vadd.f32 %v487, %v489
    %v491 = vstv %s101
    %v492 = vmul.f32 %v314, %v491
    %v493 = vadd.f32 %v490, %v492
    %v494 = vstv %s109
    %v495 = vmul.f32 %v328, %v494
    %v496 = vadd.f32 %v493, %v495
    %v497 = vstv %s117
    %v498 = vmul.f32 %v342, %v497
    %v499 = vadd.f32 %v496, %v498
    %v500 = vstv %s125
    %v501 = vadd.f32 %v499, %v500
    %v502 = vmax.f32 %v501, 0.0
    %v503 = vstv %s126
    %v504 = vmul.f32 %v362, %v503
    %v505 = vstv %s136
    %v506 = vmul.f32 %v382, %v505
    %v507 = vadd.f32 %v504, %v506
    %v508 = vstv %s146
    %v509 = vmul.f32 %v402, %v508
    %v510 = vadd.f32 %v507, %v509
    %v511 = vstv %s156
    %v512 = vmul.f32 %v422, %v511
    %v513 = vadd.f32 %v510, %v512
    %v514 = vstv %s166
    %v515 = vmul.f32 %v442, %v514
    %v516 = vadd.f32 %v513, %v515
    %v517 = vstv %s176
    %v518 = vmul.f32 %v462, %v517
    %v519 = vadd.f32 %v516, %v518
    %v520 = vstv %s186
    %v521 = vmul.f32 %v482, %v520
    %v522 = vadd.f32 %v519, %v521
    %v523 = vstv %s196
    %v524 = vmul.f32 %v502, %v523
    %v525 = vadd.f32 %v522, %v524
    %v526 = vstv %s206
    %v527 = vadd.f32 %v525, %v526
    %v528 = vstv %s127
    %v529 = vmul.f32 %v362, %v528
    %v530 = vstv %s137
    %v531 = vmul.f32 %v382, %v530
    %v532 = vadd.f32 %v529, %v531
    %v533 = vstv %s147
    %v534 = vmul.f32 %v402, %v533
    %v535 = vadd.f32 %v532, %v534
    %v536 = vstv %s157
    %v537 = vmul.f32 %v422, %v536
    %v538 = vadd.f32 %v535, %v537
    %v539 = vstv %s167
    %v540 = vmul.f32 %v442, %v539
    %v541 = vadd.f32 %v538, %v540
    %v542 = vstv %s177
    %v543 = vmul.f32 %v462, %v542
    %v544 = vadd.f32 %v541, %v543
    %v545 = vstv %s187
    %v546 = vmul.f32 %v482, %v545
    %v547 = vadd.f32 %v544, %v546
    %v548 = vstv %s197
    %v549 = vmul.f32 %v502, %v548
    %v550 = vadd.f32 %v547, %v549
    %v551 = vstv %s207
    %v552 = vadd.f32 %v550, %v551
    %v553 = vstv %s128
    %v554 = vmul.f32 %v362, %v553
    %v555 = vstv %s138
    %v556 = vmul.f32 %v382, %v555
    %v557 = vadd.f32 %v554, %v556
    %v558 = vstv %s148
    %v559 = vmul.f32 %v402, %v558
    %v560 = vadd.f32 %v557, %v559
    %v561 = vstv %s158
    %v562 = vmul.f32 %v422, %v561
    %v563 = vadd.f32 %v560, %v562
    %v564 = vstv %s168
    %v565 = vmul.f32 %v442, %v564
    %v566 = vadd.f32 %v563, %v565
    %v567 = vstv %s178
    %v568 = vmul.f32 %v462, %v567
    %v569 = vadd.f32 %v566, %v568
    %v570 = vstv %s188
    %v571 = vmul.f32 %v482, %v570
    %v572 = vadd.f32 %v569, %v571
    %v573 = vstv %s198
    %v574 = vmul.f32 %v502, %v573
    %v575 = vadd.f32 %v572, %v574
    %v576 = vstv %s208
    %v577 = vadd.f32 %v575, %v576
    %v578 = vstv %s129
    %v579 = vmul.f32 %v362, %v578
    %v580 = vstv %s139
    %v581 = vmul.f32 %v382, %v580
    %v582 = vadd.f32 %v579, %v581
    %v583 = vstv %s149
    %v584 = vmul.f32 %v402, %v583
    %v585 = vadd.f32 %v582, %v584
    %v586 = vstv %s159
    %v587 = vmul.f32 %v422, %v586
    %v588 = vadd.f32 %v585, %v587
    %v589 = vstv %s169
    %v590 = vmul.f32 %v442, %v589
    %v591 = vadd.f32 %v588, %v590
    %v592 = vstv %s179
    %v593 = vmul.f32 %v462, %v592
    %v594 = vadd.f32 %v591, %v593
    %v595 = vstv %s189
    %v596 = vmul.f32 %v482, %v595
    %v597 = vadd.f32 %v594, %v596
    %v598 = vstv %s199
    %v599 = vmul.f32 %v502, %v598
    %v600 = vadd.f32 %v597, %v599
    %v601 = vstv %s209
    %v602 = vadd.f32 %v600, %v601
    %v603 = vstv %s130
    %v604 = vmul.f32 %v362, %v603
    %v605 = vstv %s140
    %v606 = vmul.f32 %v382, %v605
    %v607 = vadd.f32 %v604, %v606
    %v608 = vstv %s150
    %v609 = vmul.f32 %v402, %v608
    %v610 = vadd.f32 %v607, %v609
    %v611 = vstv %s160
    %v612 = vmul.f32 %v422, %v611
    %v613 = vadd.f32 %v610, %v612
    %v614 = vstv %s170
    %v615 = vmul.f32 %v442, %v614
    %v616 = vadd.f32 %v613, %v615
    %v617 = vstv %s180
    %v618 = vmul.f32 %v462, %v617
    %v619 = vadd.f32 %v616, %v618
    %v620 = vstv %s190
    %v621 = vmul.f32 %v482, %v620
    %v622 = vadd.f32 %v619, %v621
    %v623 = vstv %s200
    %v624 = vmul.f32 %v502, %v623
    %v625 = vadd.f32 %v622, %v624
    %v626 = vstv %s210
    %v627 = vadd.f32 %v625, %v626
    %v628 = vstv %s131
    %v629 = vmul.f32 %v362, %v628
    %v630 = vstv %s141
    %v631 = vmul.f32 %v382, %v630
    %v632 = vadd.f32 %v629, %v631
    %v633 = vstv %s151
    %v634 = vmul.f32 %v402, %v633
    %v635 = vadd.f32 %v632, %v634
    %v636 = vstv %s161
    %v637 = vmul.f32 %v422, %v636
    %v638 = vadd.f32 %v635, %v637
    %v639 = vstv %s171
    %v640 = vmul.f32 %v442, %v639
    %v641 = vadd.f32 %v638, %v640
    %v642 = vstv %s181
    %v643 = vmul.f32 %v462, %v642
    %v644 = vadd.f32 %v641, %v643
    %v645 = vstv %s191
    %v646 = vmul.f32 %v482, %v645
    %v647 = vadd.f32 %v644, %v646
    %v648 = vstv %s201
    %v649 = vmul.f32 %v502, %v648
    %v650 = vadd.f32 %v647, %v649
    %v651 = vstv %s211
    %v652 = vadd.f32 %v650, %v651
    %v653 = vstv %s132
    %v654 = vmul.f32 %v362, %v653
    %v655 = vstv %s142
    %v656 = vmul.f32 %v382, %v655
    %v657 = vadd.f32 %v654, %v656
    %v658 = vstv %s152
    %v659 = vmul.f32 %v402, %v658
    %v660 = vadd.f32 %v657, %v659
    %v661 = vstv %s162
    %v662 = vmul.f32 %v422, %v661
    %v663 = vadd.f32 %v660, %v662
    %v664 = vstv %s172
    %v665 = vmul.f32 %v442, %v664
    %v666 = vadd.f32 %v663, %v665
    %v667 = vstv %s182
    %v668 = vmul.f32 %v462, %v667
    %v669 = vadd.f32 %v666, %v668
    %v670 = vstv %s192
    %v671 = vmul.f32 %v482, %v670
    %v672 = vadd.f32 %v669, %v671
    %v673 = vstv %s202
    %v674 = vmul.f32 %v502, %v673
    %v675 = vadd.f32 %v672, %v674
    %v676 = vstv %s212
    %v677 = vadd.f32 %v675, %v676
    %v678 = vstv %s133
    %v679 = vmul.f32 %v362, %v678
    %v680 = vstv %s143
    %v681 = vmul.f32 %v382, %v680
    %v682 = vadd.f32 %v679, %v681
    %v683 = vstv %s153
    %v684 = vmul.f32 %v402, %v683
    %v685 = vadd.f32 %v682, %v684
    %v686 = vstv %s163
    %v687 = vmul.f32 %v422, %v686
    %v688 = vadd.f32 %v685, %v687
    %v689 = vstv %s173
    %v690 = vmul.f32 %v442, %v689
    %v691 = vadd.f32 %v688, %v690
    %v692 = vstv %s183
    %v693 = vmul.f32 %v462, %v692
    %v694 = vadd.f32 %v691, %v693
    %v695 = vstv %s193
    %v696 = vmul.f32 %v482, %v695
    %v697 = vadd.f32 %v694, %v696
    %v698 = vstv %s203
    %v699 = vmul.f32 %v502, %v698
    %v700 = vadd.f32 %v697, %v699
    %v701 = vstv %s213
    %v702 = vadd.f32 %v700, %v701
    %v703 = vstv %s134
    %v704 = vmul.f32 %v362, %v703
    %v705 = vstv %s144
    %v706 = vmul.f32 %v382, %v705
    %v707 = vadd.f32 %v704, %v706
    %v708 = vstv %s154
    %v709 = vmul.f32 %v402, %v708
    %v710 = vadd.f32 %v707, %v709
    %v711 = vstv %s164
    %v712 = vmul.f32 %v422, %v711
    %v713 = vadd.f32 %v710, %v712
    %v714 = vstv %s174
    %v715 = vmul.f32 %v442, %v714
    %v716 = vadd.f32 %v713, %v715
    %v717 = vstv %s184
    %v718 = vmul.f32 %v462, %v717
    %v719 = vadd.f32 %v716, %v718
    %v720 = vstv %s194
    %v721 = vmul.f32 %v482, %v720
    %v722 = vadd.f32 %v719, %v721
    %v723 = vstv %s204
    %v724 = vmul.f32 %v502, %v723
    %v725 = vadd.f32 %v722, %v724
    %v726 = vstv %s214
    %v727 = vadd.f32 %v725, %v726
    %v728 = vstv %s135
    %v729 = vmul.f32 %v362, %v728
    %v730 = vstv %s145
    %v731 = vmul.f32 %v382, %v730
    %v732 = vadd.f32 %v729, %v731
    %v733 = vstv %s155
    %v734 = vmul.f32 %v402, %v733
    %v735 = vadd.f32 %v732, %v734
    %v736 = vstv %s165
    %v737 = vmul.f32 %v422, %v736
    %v738 = vadd.f32 %v735, %v737
    %v739 = vstv %s175
    %v740 = vmul.f32 %v442, %v739
    %v741 = vadd.f32 %v738, %v740
    %v742 = vstv %s185
    %v743 = vmul.f32 %v462, %v742
    %v744 = vadd.f32 %v741, %v743
    %v745 = vstv %s195
    %v746 = vmul.f32 %v482, %v745
    %v747 = vadd.f32 %v744, %v746
    %v748 = vstv %s205
    %v749 = vmul.f32 %v502, %v748
    %v750 = vadd.f32 %v747, %v749
    %v751 = vstv %s215
    %v752 = vadd.f32 %v750, %v751
    %753 = vst [vmem:[%s2] sm:$0xff] %v527
    %s754 = scalar_lea.vmem %s2, 8
    %755 = vst [vmem:[%s754] sm:$0xff] %v552
    %s756 = scalar_lea.vmem %s2, 16
    %757 = vst [vmem:[%s756] sm:$0xff] %v577
    %s758 = scalar_lea.vmem %s2, 24
    %759 = vst [vmem:[%s758] sm:$0xff] %v602
    %s760 = scalar_lea.vmem %s2, 32
    %761 = vst [vmem:[%s760] sm:$0xff] %v627
    %s762 = scalar_lea.vmem %s2, 40
    %763 = vst [vmem:[%s762] sm:$0xff] %v652
    %s764 = scalar_lea.vmem %s2, 48
    %765 = vst [vmem:[%s764] sm:$0xff] %v677
    %s766 = scalar_lea.vmem %s2, 56
    %767 = vst [vmem:[%s766] sm:$0xff] %v702
    %s768 = scalar_lea.vmem %s2, 64
    %769 = vst [vmem:[%s768] sm:$0xff] %v727
    %s770 = scalar_lea.vmem %s2, 72
    %771 = vst [vmem:[%s770] sm:$0xff] %v752
    // Predicated region
    $region14: #{decoder_net_block.1} parent=1 // pred_check
      _
    $region15: #{decoder_net_block.1} parent=1 // pred_check_branch
      %773 = sbr.rel (0) target = $region17
    $region16: #{decoder_net_block.1} parent=1 // pred_region
      _
    $region17: #{decoder_net_block.1} parent=1 // pred_fallthru
      _
    // Predicated region
    $region18: #{decoder_net_block.1} parent=1 // pred_check
      _
    $region19: #{decoder_net_block.1} parent=1 // pred_check_branch
      %775 = sbr.rel (0) target = $region21
    $region20: #{decoder_net_block.1} parent=1 // pred_region
      _
    $region21: #{decoder_net_block.1} parent=1 // pred_fallthru
      _
    %776 = vsyncpa [#allocation3], 1

</llo_original>
